<compile_context>
chip_gen: v7x
topology: tpu7x:2x2x1
jax: 0.10.0
libtpu: 0.0.40
codegen_flags: <defaults>
</compile_context>

<pallas_src>
import jax
import jax.numpy as jnp
from jax.experimental import pallas as pl
from jax.experimental.pallas import tpu as pltpu

INPUT_DIM = 125
HIDDEN = 8
D_PAD = 128  # 125 padded to a lane-friendly 128 inside the kernel (exact: pad is zeros)


def _vpu_matvec(h, w):
    """(Bc, H) @ (H, G) as H unrolled broadcast-FMAs on the VPU.

    Keeps the MXU completely out of the serialized recurrence; the only MXU user is the
    hoisted per-chunk input projection.
    """
    acc = h[:, 0:1] * w[0:1, :]
    for k in range(1, w.shape[0]):
        acc = acc + h[:, k:k + 1] * w[k:k + 1, :]
    return acc


def lstm_fc_kernel(x_ref, wih_ref, b_ref, whh_ref, wfc_ref, bfc_ref,
                   out_ref, xp_ref, h_ref, c_ref):
    """One (batch-block, time-chunk) grid step of the LSTM + final Linear.

    x_ref   : (Bc, Tc, 125)  chunk of inputs (natural batch-major layout)
    wih_ref : (128, 4H)      input->gates weights (transposed, rows >=125 are zero)
    b_ref   : (1, 4H)        combined bias (b_ih + b_hh)
    whh_ref : (H, 4H)        hidden->gates weights (transposed)
    wfc_ref : (1, H)         final Linear weight row
    bfc_ref : (1, 1)         final Linear bias
    out_ref : (Bc, 1)        output block (written on the last time chunk)
    xp_ref  : (Bc*Tc, 128)   zero-padded staging buffer for the chunk (VMEM scratch)
    h_ref   : (Bc, H)        hidden state carried across time chunks (VMEM scratch)
    c_ref   : (Bc, H)        cell  state carried across time chunks (VMEM scratch)
    """
    t_blk = pl.program_id(1)
    n_t = pl.num_programs(1)
    Bc, Tc, K = x_ref.shape
    H = whh_ref.shape[0]

    # --- per-batch-block init (time is the inner, serial 'arbitrary' axis) ------------
    @pl.when(t_blk == 0)
    def _init():
        h_ref[...] = jnp.zeros_like(h_ref)
        c_ref[...] = jnp.zeros_like(c_ref)
        # Zero the staging buffer once per batch block: lanes >= K are never written by
        # the copy below, so they stay exactly zero for every later chunk, which makes
        # the 125 -> 128 K-padding exact.
        xp_ref[...] = jnp.zeros_like(xp_ref)

    # --- stage this chunk into the zero-padded (Bc*Tc, 128) buffer ---------------------
    for bi in range(Bc):                       # Bc is small and static
        xp_ref[bi * Tc:(bi + 1) * Tc, 0:K] = x_ref[bi]

    # --- hoisted input projection: ONE aligned MXU matmul for the whole chunk ----------
    # (bias folded in here, so it is not re-broadcast every timestep)
    gates_x = (jnp.dot(xp_ref[...], wih_ref[...], preferred_element_type=jnp.float32)
               + b_ref[...])                   # (Bc*Tc, 4H), gate order i|f|g|o
    gates_x = gates_x.reshape(Bc, Tc, 4 * H)   # Tc is kept a multiple of 8 (or == T)

    whh = whh_ref[...]                         # (H, 4H), loaded once per chunk
    h = h_ref[...]
    c = c_ref[...]

    # --- recurrence: fully unrolled static loop; only tiny VPU/EUP work on the serial
    #     path (no MXU, no bias broadcast, no x matmul) --------------------------------
    for t in range(Tc):
        gates = gates_x[:, t, :] + _vpu_matvec(h, whh)   # (Bc, 4H)
        i = jax.nn.sigmoid(gates[:, 0:H])
        f = jax.nn.sigmoid(gates[:, H:2 * H])
        g = jnp.tanh(gates[:, 2 * H:3 * H])
        o = jax.nn.sigmoid(gates[:, 3 * H:4 * H])
        c = f * c + i * g
        h = o * jnp.tanh(c)

    h_ref[...] = h
    c_ref[...] = c

    # --- final Linear on the last hidden state: VPU multiply + lane reduce (no MXU) ----
    @pl.when(t_blk == n_t - 1)
    def _finalize():
        out_ref[...] = (jnp.sum(h * wfc_ref[...], axis=1, keepdims=True)
                        + bfc_ref[...])


def _pick_time_chunk(T, cap=64):
    """Largest multiple-of-8 divisor of T (<= cap); fall back to the whole sequence.

    Multiples of 8 keep the x BlockSpec and the in-kernel reshape sublane-aligned.
    """
    if T % 8 != 0:
        return T
    c = min(cap, T)
    c -= c % 8
    while T % c != 0:
        c -= 8
    return c


def machine_forward(params, image, moisture=None, temperature=None):
    """Pallas equivalent of Machine.forward. moisture/temperature unused (as in PyTorch)."""
    B, T, D = image.shape
    assert D == INPUT_DIM
    x = image.astype(jnp.float32)                       # (B, T, 125), no transpose/pad copy

    # ---- tiny weight repacking (all matmuls in-kernel are row-major (rows,K)@(K,cols)) ----
    wih = jnp.zeros((D_PAD, 4 * HIDDEN), jnp.float32).at[:INPUT_DIM].set(params["w_ih"].T)
    bias = (params["b_ih"] + params["b_hh"]).reshape(1, 4 * HIDDEN)
    whh = params["w_hh"].T                              # (8, 32)
    wfc = params["w_fc"].reshape(1, HIDDEN)             # (1, 8)
    bfc = params["b_fc"].reshape(1, 1)                  # (1, 1)

    # batch blocks shard across TensorCores on v7x ("parallel"); time chunks pipeline x DMA
    Bc = 8 if (B % 8 == 0) else B
    Tc = _pick_time_chunk(T)
    nb, nt = B // Bc, T // Tc

    in_specs = [
        pl.BlockSpec((Bc, Tc, INPUT_DIM), lambda b, t: (b, t, 0)),
        pl.BlockSpec((D_PAD, 4 * HIDDEN), lambda b, t: (0, 0)),
        pl.BlockSpec((1, 4 * HIDDEN), lambda b, t: (0, 0)),
        pl.BlockSpec((HIDDEN, 4 * HIDDEN), lambda b, t: (0, 0)),
        pl.BlockSpec((1, HIDDEN), lambda b, t: (0, 0)),
        pl.BlockSpec((1, 1), lambda b, t: (0, 0)),
    ]
    out_specs = pl.BlockSpec((Bc, 1), lambda b, t: (b, 0))
    scratch_shapes = [
        pltpu.VMEM((Bc * Tc, D_PAD), jnp.float32),      # zero-padded input staging buffer
        pltpu.VMEM((Bc, HIDDEN), jnp.float32),          # h carry
        pltpu.VMEM((Bc, HIDDEN), jnp.float32),          # c carry
    ]

    return pl.pallas_call(
        lstm_fc_kernel,
        out_shape=jax.ShapeDtypeStruct((B, 1), jnp.float32),
        grid=(nb, nt),
        in_specs=in_specs,
        out_specs=out_specs,
        scratch_shapes=scratch_shapes,
        compiler_params=pltpu.CompilerParams(
            dimension_semantics=("parallel", "arbitrary"),
            vmem_limit_bytes=32 * 1024 * 1024,          # explicit: safe on v5e/v6e/v7x
        ),
    )(x, wih, bias, whh, wfc, bfc)


def init_params(key):
    """Deterministic parameter init mirroring PyTorch's U(-1/sqrt(H), 1/sqrt(H))."""
    ks = jax.random.split(key, 6)
    bound = 1.0 / jnp.sqrt(jnp.float32(HIDDEN))
    u = lambda k, shape: jax.random.uniform(k, shape, jnp.float32, -bound, bound)
    return {
        "w_ih": u(ks[0], (4 * HIDDEN, INPUT_DIM)),  # (32, 125)
        "w_hh": u(ks[1], (4 * HIDDEN, HIDDEN)),     # (32, 8)
        "b_ih": u(ks[2], (4 * HIDDEN,)),
        "b_hh": u(ks[3], (4 * HIDDEN,)),
        "w_fc": u(ks[4], (1, HIDDEN)),
        "b_fc": u(ks[5], (1,)),
    }


def machine_forward_ref(params, image):
    """Pure-JAX reference (PyTorch LSTM semantics) for validation."""
    B, T, _ = image.shape
    H = HIDDEN
    h = jnp.zeros((B, H), jnp.float32)
    c = jnp.zeros((B, H), jnp.float32)
    for t in range(T):
        x_t = image[:, t, :].astype(jnp.float32)
        gates = (x_t @ params["w_ih"].T + params["b_ih"]
                 + h @ params["w_hh"].T + params["b_hh"])
        i = jax.nn.sigmoid(gates[:, 0:H])
        f = jax.nn.sigmoid(gates[:, H:2 * H])
        g = jnp.tanh(gates[:, 2 * H:3 * H])
        o = jax.nn.sigmoid(gates[:, 3 * H:4 * H])
        c = f * c + i * g
        h = o * jnp.tanh(c)
    return h @ params["w_fc"].T + params["b_fc"]


if __name__ == "__main__":
    key = jax.random.PRNGKey(0)
    k_param, k_img, k_m, k_t = jax.random.split(key, 4)

    B, T = 2, 8
    image = jax.random.normal(k_img, (B, T, INPUT_DIM), jnp.float32)
    moisture = jax.random.normal(k_m, (B,), jnp.float32)     # unused, as in PyTorch
    temperature = jax.random.normal(k_t, (B,), jnp.float32)  # unused, as in PyTorch

    params = init_params(k_param)

    out = machine_forward(params, image, moisture, temperature)
    out = jax.block_until_ready(out)

    ref = machine_forward_ref(params, image)
    assert out.shape == (B, 1)
    assert jnp.allclose(out, ref, atol=1e-5, rtol=1e-5), (out, ref)

    print("KERNEL_OK")
</pallas_src>

<mosaic_0001>
module attributes {stable_mosaic.version = 11 : i64} {
  func.func @lstm_fc_kernel(%arg0: i32, %arg1: i32, %arg2: memref<2x8x125xf32, #tpu.memory_space<vmem>>, %arg3: memref<128x32xf32, #tpu.memory_space<vmem>>, %arg4: memref<1x32xf32, #tpu.memory_space<vmem>>, %arg5: memref<8x32xf32, #tpu.memory_space<vmem>>, %arg6: memref<1x8xf32, #tpu.memory_space<vmem>>, %arg7: memref<1x1xf32, #tpu.memory_space<vmem>>, %arg8: memref<2x1xf32, #tpu.memory_space<vmem>>, %arg9: memref<16x128xf32, #tpu.memory_space<vmem>>, %arg10: memref<2x8xf32, #tpu.memory_space<vmem>>, %arg11: memref<2x8xf32, #tpu.memory_space<vmem>>) attributes {dimension_semantics = [#tpu.dimension_semantics<parallel>, #tpu.dimension_semantics<arbitrary>], iteration_bounds = array<i64: 1, 1>, scalar_prefetch = 0 : i64, scratch_operands = 3 : i64, tpu.core_type = #tpu.core_type<tc>, window_params = [{transform_indices = @transform_0, window_bounds = array<i64: 2, 8, 125>}, {pipeline_mode = #tpu.pipeline_mode<synchronous>, transform_indices = @transform_1, window_bounds = array<i64: 128, 32>}, {pipeline_mode = #tpu.pipeline_mode<synchronous>, transform_indices = @transform_2, window_bounds = array<i64: 1, 32>}, {pipeline_mode = #tpu.pipeline_mode<synchronous>, transform_indices = @transform_3, window_bounds = array<i64: 8, 32>}, {pipeline_mode = #tpu.pipeline_mode<synchronous>, transform_indices = @transform_4, window_bounds = array<i64: 1, 8>}, {pipeline_mode = #tpu.pipeline_mode<synchronous>, transform_indices = @transform_5, window_bounds = array<i64: 1, 1>}, {transform_indices = @transform_6, window_bounds = array<i64: 2, 1>}]} {
    %c0_i32 = arith.constant 0 : i32
    %0 = arith.cmpi eq, %arg1, %c0_i32 : i32
    %1 = arith.extui %0 : i1 to i32
    %c0_i32_0 = arith.constant 0 : i32
    %2 = arith.cmpi ne, %1, %c0_i32_0 : i32
    scf.if %2 {
      %cst_50 = arith.constant 0.000000e+00 : f32
      %624 = vector.broadcast %cst_50 : f32 to vector<2x8xf32>
      %c0_51 = arith.constant 0 : index
      %c0_52 = arith.constant 0 : index
      %625 = vector.load %arg10[%c0_51, %c0_52] : memref<2x8xf32, #tpu.memory_space<vmem>>, vector<2x8xf32>
      tpu.vector_store %arg10[%c0_51, %c0_52], %624 {strides = array<i32>} : memref<2x8xf32, #tpu.memory_space<vmem>>, vector<2x8xf32>,
      %cst_53 = arith.constant 0.000000e+00 : f32
      %626 = vector.broadcast %cst_53 : f32 to vector<2x8xf32>
      %c0_54 = arith.constant 0 : index
      %c0_55 = arith.constant 0 : index
      %627 = vector.load %arg11[%c0_54, %c0_55] : memref<2x8xf32, #tpu.memory_space<vmem>>, vector<2x8xf32>
      tpu.vector_store %arg11[%c0_54, %c0_55], %626 {strides = array<i32>} : memref<2x8xf32, #tpu.memory_space<vmem>>, vector<2x8xf32>,
      %cst_56 = arith.constant 0.000000e+00 : f32
      %628 = vector.broadcast %cst_56 : f32 to vector<16x128xf32>
      %c0_57 = arith.constant 0 : index
      %c0_58 = arith.constant 0 : index
      %629 = vector.load %arg9[%c0_57, %c0_58] : memref<16x128xf32, #tpu.memory_space<vmem>>, vector<16x128xf32>
      tpu.vector_store %arg9[%c0_57, %c0_58], %628 {strides = array<i32>} : memref<16x128xf32, #tpu.memory_space<vmem>>, vector<16x128xf32>,
    } else {
    }
    %c0 = arith.constant 0 : index
    %c0_1 = arith.constant 0 : index
    %c0_2 = arith.constant 0 : index
    %3 = vector.load %arg2[%c0, %c0_1, %c0_2] : memref<2x8x125xf32, #tpu.memory_space<vmem>>, vector<1x8x125xf32>
    %4 = vector.shape_cast %3 : vector<1x8x125xf32> to vector<8x125xf32>
    %c0_3 = arith.constant 0 : index
    %c0_4 = arith.constant 0 : index
    %5 = vector.load %arg9[%c0_3, %c0_4] : memref<16x128xf32, #tpu.memory_space<vmem>>, vector<8x125xf32>
    tpu.vector_store %arg9[%c0_3, %c0_4], %4 {strides = array<i32>} : memref<16x128xf32, #tpu.memory_space<vmem>>, vector<8x125xf32>,
    %c1 = arith.constant 1 : index
    %c0_5 = arith.constant 0 : index
    %c0_6 = arith.constant 0 : index
    %6 = vector.load %arg2[%c1, %c0_5, %c0_6] : memref<2x8x125xf32, #tpu.memory_space<vmem>>, vector<1x8x125xf32>
    %7 = vector.shape_cast %6 : vector<1x8x125xf32> to vector<8x125xf32>
    %c8 = arith.constant 8 : index
    %c0_7 = arith.constant 0 : index
    %8 = vector.load %arg9[%c8, %c0_7] : memref<16x128xf32, #tpu.memory_space<vmem>>, vector<8x125xf32>
    tpu.vector_store %arg9[%c8, %c0_7], %7 {strides = array<i32>} : memref<16x128xf32, #tpu.memory_space<vmem>>, vector<8x125xf32>,
    %c0_8 = arith.constant 0 : index
    %c0_9 = arith.constant 0 : index
    %9 = vector.load %arg9[%c0_8, %c0_9] : memref<16x128xf32, #tpu.memory_space<vmem>>, vector<16x128xf32>
    %c0_10 = arith.constant 0 : index
    %c0_11 = arith.constant 0 : index
    %10 = vector.load %arg3[%c0_10, %c0_11] : memref<128x32xf32, #tpu.memory_space<vmem>>, vector<128x32xf32>
    %cst = arith.constant dense<0.000000e+00> : vector<16x32xf32>
    %11 = tpu.matmul %9, %10, %cst {dimension_numbers = #tpu.dot_dimension_numbers<[1], [0], [0], [1], [0, 0, 1, 1], [], []>} : vector<16x128xf32>, vector<128x32xf32>, vector<16x32xf32> -> vector<16x32xf32>
    %c0_12 = arith.constant 0 : index
    %c0_13 = arith.constant 0 : index
    %12 = vector.load %arg4[%c0_12, %c0_13] : memref<1x32xf32, #tpu.memory_space<vmem>>, vector<1x32xf32>
    %13 = vector.broadcast %12 : vector<1x32xf32> to vector<16x32xf32>
    %14 = arith.addf %11, %13 : vector<16x32xf32>
    %15 = vector.shape_cast %14 : vector<16x32xf32> to vector<2x8x32xf32>
    %c0_14 = arith.constant 0 : index
    %c0_15 = arith.constant 0 : index
    %16 = vector.load %arg5[%c0_14, %c0_15] : memref<8x32xf32, #tpu.memory_space<vmem>>, vector<8x32xf32>
    %c0_16 = arith.constant 0 : index
    %c0_17 = arith.constant 0 : index
    %17 = vector.load %arg10[%c0_16, %c0_17] : memref<2x8xf32, #tpu.memory_space<vmem>>, vector<2x8xf32>
    %c0_18 = arith.constant 0 : index
    %c0_19 = arith.constant 0 : index
    %18 = vector.load %arg11[%c0_18, %c0_19] : memref<2x8xf32, #tpu.memory_space<vmem>>, vector<2x8xf32>
    %19 = vector.extract_strided_slice %15 {offsets = [0, 0, 0], sizes = [2, 1, 32], strides = [1, 1, 1]} : vector<2x8x32xf32> to vector<2x1x32xf32>
    %20 = vector.shape_cast %19 : vector<2x1x32xf32> to vector<2x32xf32>
    %21 = vector.extract_strided_slice %17 {offsets = [0, 0], sizes = [2, 1], strides = [1, 1]} : vector<2x8xf32> to vector<2x1xf32>
    %22 = vector.extract_strided_slice %16 {offsets = [0, 0], sizes = [1, 32], strides = [1, 1]} : vector<8x32xf32> to vector<1x32xf32>
    %23 = vector.broadcast %21 : vector<2x1xf32> to vector<2x32xf32>
    %24 = vector.broadcast %22 : vector<1x32xf32> to vector<2x32xf32>
    %25 = arith.mulf %23, %24 : vector<2x32xf32>
    %26 = vector.extract_strided_slice %17 {offsets = [0, 1], sizes = [2, 1], strides = [1, 1]} : vector<2x8xf32> to vector<2x1xf32>
    %27 = vector.extract_strided_slice %16 {offsets = [1, 0], sizes = [1, 32], strides = [1, 1]} : vector<8x32xf32> to vector<1x32xf32>
    %28 = vector.broadcast %26 : vector<2x1xf32> to vector<2x32xf32>
    %29 = vector.broadcast %27 : vector<1x32xf32> to vector<2x32xf32>
    %30 = arith.mulf %28, %29 : vector<2x32xf32>
    %31 = arith.addf %25, %30 : vector<2x32xf32>
    %32 = vector.extract_strided_slice %17 {offsets = [0, 2], sizes = [2, 1], strides = [1, 1]} : vector<2x8xf32> to vector<2x1xf32>
    %33 = vector.extract_strided_slice %16 {offsets = [2, 0], sizes = [1, 32], strides = [1, 1]} : vector<8x32xf32> to vector<1x32xf32>
    %34 = vector.broadcast %32 : vector<2x1xf32> to vector<2x32xf32>
    %35 = vector.broadcast %33 : vector<1x32xf32> to vector<2x32xf32>
    %36 = arith.mulf %34, %35 : vector<2x32xf32>
    %37 = arith.addf %31, %36 : vector<2x32xf32>
    %38 = vector.extract_strided_slice %17 {offsets = [0, 3], sizes = [2, 1], strides = [1, 1]} : vector<2x8xf32> to vector<2x1xf32>
    %39 = vector.extract_strided_slice %16 {offsets = [3, 0], sizes = [1, 32], strides = [1, 1]} : vector<8x32xf32> to vector<1x32xf32>
    %40 = vector.broadcast %38 : vector<2x1xf32> to vector<2x32xf32>
    %41 = vector.broadcast %39 : vector<1x32xf32> to vector<2x32xf32>
    %42 = arith.mulf %40, %41 : vector<2x32xf32>
    %43 = arith.addf %37, %42 : vector<2x32xf32>
    %44 = vector.extract_strided_slice %17 {offsets = [0, 4], sizes = [2, 1], strides = [1, 1]} : vector<2x8xf32> to vector<2x1xf32>
    %45 = vector.extract_strided_slice %16 {offsets = [4, 0], sizes = [1, 32], strides = [1, 1]} : vector<8x32xf32> to vector<1x32xf32>
    %46 = vector.broadcast %44 : vector<2x1xf32> to vector<2x32xf32>
    %47 = vector.broadcast %45 : vector<1x32xf32> to vector<2x32xf32>
    %48 = arith.mulf %46, %47 : vector<2x32xf32>
    %49 = arith.addf %43, %48 : vector<2x32xf32>
    %50 = vector.extract_strided_slice %17 {offsets = [0, 5], sizes = [2, 1], strides = [1, 1]} : vector<2x8xf32> to vector<2x1xf32>
    %51 = vector.extract_strided_slice %16 {offsets = [5, 0], sizes = [1, 32], strides = [1, 1]} : vector<8x32xf32> to vector<1x32xf32>
    %52 = vector.broadcast %50 : vector<2x1xf32> to vector<2x32xf32>
    %53 = vector.broadcast %51 : vector<1x32xf32> to vector<2x32xf32>
    %54 = arith.mulf %52, %53 : vector<2x32xf32>
    %55 = arith.addf %49, %54 : vector<2x32xf32>
    %56 = vector.extract_strided_slice %17 {offsets = [0, 6], sizes = [2, 1], strides = [1, 1]} : vector<2x8xf32> to vector<2x1xf32>
    %57 = vector.extract_strided_slice %16 {offsets = [6, 0], sizes = [1, 32], strides = [1, 1]} : vector<8x32xf32> to vector<1x32xf32>
    %58 = vector.broadcast %56 : vector<2x1xf32> to vector<2x32xf32>
    %59 = vector.broadcast %57 : vector<1x32xf32> to vector<2x32xf32>
    %60 = arith.mulf %58, %59 : vector<2x32xf32>
    %61 = arith.addf %55, %60 : vector<2x32xf32>
    %62 = vector.extract_strided_slice %17 {offsets = [0, 7], sizes = [2, 1], strides = [1, 1]} : vector<2x8xf32> to vector<2x1xf32>
    %63 = vector.extract_strided_slice %16 {offsets = [7, 0], sizes = [1, 32], strides = [1, 1]} : vector<8x32xf32> to vector<1x32xf32>
    %64 = vector.broadcast %62 : vector<2x1xf32> to vector<2x32xf32>
    %65 = vector.broadcast %63 : vector<1x32xf32> to vector<2x32xf32>
    %66 = arith.mulf %64, %65 : vector<2x32xf32>
    %67 = arith.addf %61, %66 : vector<2x32xf32>
    %68 = arith.addf %20, %67 : vector<2x32xf32>
    %69 = vector.extract_strided_slice %68 {offsets = [0, 0], sizes = [2, 8], strides = [1, 1]} : vector<2x32xf32> to vector<2x8xf32>
    %70 = arith.negf %69 : vector<2x8xf32>
    %71 = math.exp %70 : vector<2x8xf32>
    %cst_20 = arith.constant 1.000000e+00 : f32
    %72 = vector.broadcast %cst_20 : f32 to vector<2x8xf32>
    %73 = arith.addf %72, %71 : vector<2x8xf32>
    %74 = arith.divf %72, %73 : vector<2x8xf32>
    %75 = vector.extract_strided_slice %68 {offsets = [0, 8], sizes = [2, 8], strides = [1, 1]} : vector<2x32xf32> to vector<2x8xf32>
    %76 = arith.negf %75 : vector<2x8xf32>
    %77 = math.exp %76 : vector<2x8xf32>
    %cst_21 = arith.constant 1.000000e+00 : f32
    %78 = vector.broadcast %cst_21 : f32 to vector<2x8xf32>
    %79 = arith.addf %78, %77 : vector<2x8xf32>
    %80 = arith.divf %78, %79 : vector<2x8xf32>
    %81 = vector.extract_strided_slice %68 {offsets = [0, 16], sizes = [2, 8], strides = [1, 1]} : vector<2x32xf32> to vector<2x8xf32>
    %82 = math.tanh %81 : vector<2x8xf32>
    %83 = vector.extract_strided_slice %68 {offsets = [0, 24], sizes = [2, 8], strides = [1, 1]} : vector<2x32xf32> to vector<2x8xf32>
    %84 = arith.negf %83 : vector<2x8xf32>
    %85 = math.exp %84 : vector<2x8xf32>
    %cst_22 = arith.constant 1.000000e+00 : f32
    %86 = vector.broadcast %cst_22 : f32 to vector<2x8xf32>
    %87 = arith.addf %86, %85 : vector<2x8xf32>
    %88 = arith.divf %86, %87 : vector<2x8xf32>
    %89 = arith.mulf %80, %18 : vector<2x8xf32>
    %90 = arith.mulf %74, %82 : vector<2x8xf32>
    %91 = arith.addf %89, %90 : vector<2x8xf32>
    %92 = math.tanh %91 : vector<2x8xf32>
    %93 = arith.mulf %88, %92 : vector<2x8xf32>
    %94 = vector.extract_strided_slice %15 {offsets = [0, 1, 0], sizes = [2, 1, 32], strides = [1, 1, 1]} : vector<2x8x32xf32> to vector<2x1x32xf32>
    %95 = vector.shape_cast %94 : vector<2x1x32xf32> to vector<2x32xf32>
    %96 = vector.extract_strided_slice %93 {offsets = [0, 0], sizes = [2, 1], strides = [1, 1]} : vector<2x8xf32> to vector<2x1xf32>
    %97 = vector.extract_strided_slice %16 {offsets = [0, 0], sizes = [1, 32], strides = [1, 1]} : vector<8x32xf32> to vector<1x32xf32>
    %98 = vector.broadcast %96 : vector<2x1xf32> to vector<2x32xf32>
    %99 = vector.broadcast %97 : vector<1x32xf32> to vector<2x32xf32>
    %100 = arith.mulf %98, %99 : vector<2x32xf32>
    %101 = vector.extract_strided_slice %93 {offsets = [0, 1], sizes = [2, 1], strides = [1, 1]} : vector<2x8xf32> to vector<2x1xf32>
    %102 = vector.extract_strided_slice %16 {offsets = [1, 0], sizes = [1, 32], strides = [1, 1]} : vector<8x32xf32> to vector<1x32xf32>
    %103 = vector.broadcast %101 : vector<2x1xf32> to vector<2x32xf32>
    %104 = vector.broadcast %102 : vector<1x32xf32> to vector<2x32xf32>
    %105 = arith.mulf %103, %104 : vector<2x32xf32>
    %106 = arith.addf %100, %105 : vector<2x32xf32>
    %107 = vector.extract_strided_slice %93 {offsets = [0, 2], sizes = [2, 1], strides = [1, 1]} : vector<2x8xf32> to vector<2x1xf32>
    %108 = vector.extract_strided_slice %16 {offsets = [2, 0], sizes = [1, 32], strides = [1, 1]} : vector<8x32xf32> to vector<1x32xf32>
    %109 = vector.broadcast %107 : vector<2x1xf32> to vector<2x32xf32>
    %110 = vector.broadcast %108 : vector<1x32xf32> to vector<2x32xf32>
    %111 = arith.mulf %109, %110 : vector<2x32xf32>
    %112 = arith.addf %106, %111 : vector<2x32xf32>
    %113 = vector.extract_strided_slice %93 {offsets = [0, 3], sizes = [2, 1], strides = [1, 1]} : vector<2x8xf32> to vector<2x1xf32>
    %114 = vector.extract_strided_slice %16 {offsets = [3, 0], sizes = [1, 32], strides = [1, 1]} : vector<8x32xf32> to vector<1x32xf32>
    %115 = vector.broadcast %113 : vector<2x1xf32> to vector<2x32xf32>
    %116 = vector.broadcast %114 : vector<1x32xf32> to vector<2x32xf32>
    %117 = arith.mulf %115, %116 : vector<2x32xf32>
    %118 = arith.addf %112, %117 : vector<2x32xf32>
    %119 = vector.extract_strided_slice %93 {offsets = [0, 4], sizes = [2, 1], strides = [1, 1]} : vector<2x8xf32> to vector<2x1xf32>
    %120 = vector.extract_strided_slice %16 {offsets = [4, 0], sizes = [1, 32], strides = [1, 1]} : vector<8x32xf32> to vector<1x32xf32>
    %121 = vector.broadcast %119 : vector<2x1xf32> to vector<2x32xf32>
    %122 = vector.broadcast %120 : vector<1x32xf32> to vector<2x32xf32>
    %123 = arith.mulf %121, %122 : vector<2x32xf32>
    %124 = arith.addf %118, %123 : vector<2x32xf32>
    %125 = vector.extract_strided_slice %93 {offsets = [0, 5], sizes = [2, 1], strides = [1, 1]} : vector<2x8xf32> to vector<2x1xf32>
    %126 = vector.extract_strided_slice %16 {offsets = [5, 0], sizes = [1, 32], strides = [1, 1]} : vector<8x32xf32> to vector<1x32xf32>
    %127 = vector.broadcast %125 : vector<2x1xf32> to vector<2x32xf32>
    %128 = vector.broadcast %126 : vector<1x32xf32> to vector<2x32xf32>
    %129 = arith.mulf %127, %128 : vector<2x32xf32>
    %130 = arith.addf %124, %129 : vector<2x32xf32>
    %131 = vector.extract_strided_slice %93 {offsets = [0, 6], sizes = [2, 1], strides = [1, 1]} : vector<2x8xf32> to vector<2x1xf32>
    %132 = vector.extract_strided_slice %16 {offsets = [6, 0], sizes = [1, 32], strides = [1, 1]} : vector<8x32xf32> to vector<1x32xf32>
    %133 = vector.broadcast %131 : vector<2x1xf32> to vector<2x32xf32>
    %134 = vector.broadcast %132 : vector<1x32xf32> to vector<2x32xf32>
    %135 = arith.mulf %133, %134 : vector<2x32xf32>
    %136 = arith.addf %130, %135 : vector<2x32xf32>
    %137 = vector.extract_strided_slice %93 {offsets = [0, 7], sizes = [2, 1], strides = [1, 1]} : vector<2x8xf32> to vector<2x1xf32>
    %138 = vector.extract_strided_slice %16 {offsets = [7, 0], sizes = [1, 32], strides = [1, 1]} : vector<8x32xf32> to vector<1x32xf32>
    %139 = vector.broadcast %137 : vector<2x1xf32> to vector<2x32xf32>
    %140 = vector.broadcast %138 : vector<1x32xf32> to vector<2x32xf32>
    %141 = arith.mulf %139, %140 : vector<2x32xf32>
    %142 = arith.addf %136, %141 : vector<2x32xf32>
    %143 = arith.addf %95, %142 : vector<2x32xf32>
    %144 = vector.extract_strided_slice %143 {offsets = [0, 0], sizes = [2, 8], strides = [1, 1]} : vector<2x32xf32> to vector<2x8xf32>
    %145 = arith.negf %144 : vector<2x8xf32>
    %146 = math.exp %145 : vector<2x8xf32>
    %cst_23 = arith.constant 1.000000e+00 : f32
    %147 = vector.broadcast %cst_23 : f32 to vector<2x8xf32>
    %148 = arith.addf %147, %146 : vector<2x8xf32>
    %149 = arith.divf %147, %148 : vector<2x8xf32>
    %150 = vector.extract_strided_slice %143 {offsets = [0, 8], sizes = [2, 8], strides = [1, 1]} : vector<2x32xf32> to vector<2x8xf32>
    %151 = arith.negf %150 : vector<2x8xf32>
    %152 = math.exp %151 : vector<2x8xf32>
    %cst_24 = arith.constant 1.000000e+00 : f32
    %153 = vector.broadcast %cst_24 : f32 to vector<2x8xf32>
    %154 = arith.addf %153, %152 : vector<2x8xf32>
    %155 = arith.divf %153, %154 : vector<2x8xf32>
    %156 = vector.extract_strided_slice %143 {offsets = [0, 16], sizes = [2, 8], strides = [1, 1]} : vector<2x32xf32> to vector<2x8xf32>
    %157 = math.tanh %156 : vector<2x8xf32>
    %158 = vector.extract_strided_slice %143 {offsets = [0, 24], sizes = [2, 8], strides = [1, 1]} : vector<2x32xf32> to vector<2x8xf32>
    %159 = arith.negf %158 : vector<2x8xf32>
    %160 = math.exp %159 : vector<2x8xf32>
    %cst_25 = arith.constant 1.000000e+00 : f32
    %161 = vector.broadcast %cst_25 : f32 to vector<2x8xf32>
    %162 = arith.addf %161, %160 : vector<2x8xf32>
    %163 = arith.divf %161, %162 : vector<2x8xf32>
    %164 = arith.mulf %155, %91 : vector<2x8xf32>
    %165 = arith.mulf %149, %157 : vector<2x8xf32>
    %166 = arith.addf %164, %165 : vector<2x8xf32>
    %167 = math.tanh %166 : vector<2x8xf32>
    %168 = arith.mulf %163, %167 : vector<2x8xf32>
    %169 = vector.extract_strided_slice %15 {offsets = [0, 2, 0], sizes = [2, 1, 32], strides = [1, 1, 1]} : vector<2x8x32xf32> to vector<2x1x32xf32>
    %170 = vector.shape_cast %169 : vector<2x1x32xf32> to vector<2x32xf32>
    %171 = vector.extract_strided_slice %168 {offsets = [0, 0], sizes = [2, 1], strides = [1, 1]} : vector<2x8xf32> to vector<2x1xf32>
    %172 = vector.extract_strided_slice %16 {offsets = [0, 0], sizes = [1, 32], strides = [1, 1]} : vector<8x32xf32> to vector<1x32xf32>
    %173 = vector.broadcast %171 : vector<2x1xf32> to vector<2x32xf32>
    %174 = vector.broadcast %172 : vector<1x32xf32> to vector<2x32xf32>
    %175 = arith.mulf %173, %174 : vector<2x32xf32>
    %176 = vector.extract_strided_slice %168 {offsets = [0, 1], sizes = [2, 1], strides = [1, 1]} : vector<2x8xf32> to vector<2x1xf32>
    %177 = vector.extract_strided_slice %16 {offsets = [1, 0], sizes = [1, 32], strides = [1, 1]} : vector<8x32xf32> to vector<1x32xf32>
    %178 = vector.broadcast %176 : vector<2x1xf32> to vector<2x32xf32>
    %179 = vector.broadcast %177 : vector<1x32xf32> to vector<2x32xf32>
    %180 = arith.mulf %178, %179 : vector<2x32xf32>
    %181 = arith.addf %175, %180 : vector<2x32xf32>
    %182 = vector.extract_strided_slice %168 {offsets = [0, 2], sizes = [2, 1], strides = [1, 1]} : vector<2x8xf32> to vector<2x1xf32>
    %183 = vector.extract_strided_slice %16 {offsets = [2, 0], sizes = [1, 32], strides = [1, 1]} : vector<8x32xf32> to vector<1x32xf32>
    %184 = vector.broadcast %182 : vector<2x1xf32> to vector<2x32xf32>
    %185 = vector.broadcast %183 : vector<1x32xf32> to vector<2x32xf32>
    %186 = arith.mulf %184, %185 : vector<2x32xf32>
    %187 = arith.addf %181, %186 : vector<2x32xf32>
    %188 = vector.extract_strided_slice %168 {offsets = [0, 3], sizes = [2, 1], strides = [1, 1]} : vector<2x8xf32> to vector<2x1xf32>
    %189 = vector.extract_strided_slice %16 {offsets = [3, 0], sizes = [1, 32], strides = [1, 1]} : vector<8x32xf32> to vector<1x32xf32>
    %190 = vector.broadcast %188 : vector<2x1xf32> to vector<2x32xf32>
    %191 = vector.broadcast %189 : vector<1x32xf32> to vector<2x32xf32>
    %192 = arith.mulf %190, %191 : vector<2x32xf32>
    %193 = arith.addf %187, %192 : vector<2x32xf32>
    %194 = vector.extract_strided_slice %168 {offsets = [0, 4], sizes = [2, 1], strides = [1, 1]} : vector<2x8xf32> to vector<2x1xf32>
    %195 = vector.extract_strided_slice %16 {offsets = [4, 0], sizes = [1, 32], strides = [1, 1]} : vector<8x32xf32> to vector<1x32xf32>
    %196 = vector.broadcast %194 : vector<2x1xf32> to vector<2x32xf32>
    %197 = vector.broadcast %195 : vector<1x32xf32> to vector<2x32xf32>
    %198 = arith.mulf %196, %197 : vector<2x32xf32>
    %199 = arith.addf %193, %198 : vector<2x32xf32>
    %200 = vector.extract_strided_slice %168 {offsets = [0, 5], sizes = [2, 1], strides = [1, 1]} : vector<2x8xf32> to vector<2x1xf32>
    %201 = vector.extract_strided_slice %16 {offsets = [5, 0], sizes = [1, 32], strides = [1, 1]} : vector<8x32xf32> to vector<1x32xf32>
    %202 = vector.broadcast %200 : vector<2x1xf32> to vector<2x32xf32>
    %203 = vector.broadcast %201 : vector<1x32xf32> to vector<2x32xf32>
    %204 = arith.mulf %202, %203 : vector<2x32xf32>
    %205 = arith.addf %199, %204 : vector<2x32xf32>
    %206 = vector.extract_strided_slice %168 {offsets = [0, 6], sizes = [2, 1], strides = [1, 1]} : vector<2x8xf32> to vector<2x1xf32>
    %207 = vector.extract_strided_slice %16 {offsets = [6, 0], sizes = [1, 32], strides = [1, 1]} : vector<8x32xf32> to vector<1x32xf32>
    %208 = vector.broadcast %206 : vector<2x1xf32> to vector<2x32xf32>
    %209 = vector.broadcast %207 : vector<1x32xf32> to vector<2x32xf32>
    %210 = arith.mulf %208, %209 : vector<2x32xf32>
    %211 = arith.addf %205, %210 : vector<2x32xf32>
    %212 = vector.extract_strided_slice %168 {offsets = [0, 7], sizes = [2, 1], strides = [1, 1]} : vector<2x8xf32> to vector<2x1xf32>
    %213 = vector.extract_strided_slice %16 {offsets = [7, 0], sizes = [1, 32], strides = [1, 1]} : vector<8x32xf32> to vector<1x32xf32>
    %214 = vector.broadcast %212 : vector<2x1xf32> to vector<2x32xf32>
    %215 = vector.broadcast %213 : vector<1x32xf32> to vector<2x32xf32>
    %216 = arith.mulf %214, %215 : vector<2x32xf32>
    %217 = arith.addf %211, %216 : vector<2x32xf32>
    %218 = arith.addf %170, %217 : vector<2x32xf32>
    %219 = vector.extract_strided_slice %218 {offsets = [0, 0], sizes = [2, 8], strides = [1, 1]} : vector<2x32xf32> to vector<2x8xf32>
    %220 = arith.negf %219 : vector<2x8xf32>
    %221 = math.exp %220 : vector<2x8xf32>
    %cst_26 = arith.constant 1.000000e+00 : f32
    %222 = vector.broadcast %cst_26 : f32 to vector<2x8xf32>
    %223 = arith.addf %222, %221 : vector<2x8xf32>
    %224 = arith.divf %222, %223 : vector<2x8xf32>
    %225 = vector.extract_strided_slice %218 {offsets = [0, 8], sizes = [2, 8], strides = [1, 1]} : vector<2x32xf32> to vector<2x8xf32>
    %226 = arith.negf %225 : vector<2x8xf32>
    %227 = math.exp %226 : vector<2x8xf32>
    %cst_27 = arith.constant 1.000000e+00 : f32
    %228 = vector.broadcast %cst_27 : f32 to vector<2x8xf32>
    %229 = arith.addf %228, %227 : vector<2x8xf32>
    %230 = arith.divf %228, %229 : vector<2x8xf32>
    %231 = vector.extract_strided_slice %218 {offsets = [0, 16], sizes = [2, 8], strides = [1, 1]} : vector<2x32xf32> to vector<2x8xf32>
    %232 = math.tanh %231 : vector<2x8xf32>
    %233 = vector.extract_strided_slice %218 {offsets = [0, 24], sizes = [2, 8], strides = [1, 1]} : vector<2x32xf32> to vector<2x8xf32>
    %234 = arith.negf %233 : vector<2x8xf32>
    %235 = math.exp %234 : vector<2x8xf32>
    %cst_28 = arith.constant 1.000000e+00 : f32
    %236 = vector.broadcast %cst_28 : f32 to vector<2x8xf32>
    %237 = arith.addf %236, %235 : vector<2x8xf32>
    %238 = arith.divf %236, %237 : vector<2x8xf32>
    %239 = arith.mulf %230, %166 : vector<2x8xf32>
    %240 = arith.mulf %224, %232 : vector<2x8xf32>
    %241 = arith.addf %239, %240 : vector<2x8xf32>
    %242 = math.tanh %241 : vector<2x8xf32>
    %243 = arith.mulf %238, %242 : vector<2x8xf32>
    %244 = vector.extract_strided_slice %15 {offsets = [0, 3, 0], sizes = [2, 1, 32], strides = [1, 1, 1]} : vector<2x8x32xf32> to vector<2x1x32xf32>
    %245 = vector.shape_cast %244 : vector<2x1x32xf32> to vector<2x32xf32>
    %246 = vector.extract_strided_slice %243 {offsets = [0, 0], sizes = [2, 1], strides = [1, 1]} : vector<2x8xf32> to vector<2x1xf32>
    %247 = vector.extract_strided_slice %16 {offsets = [0, 0], sizes = [1, 32], strides = [1, 1]} : vector<8x32xf32> to vector<1x32xf32>
    %248 = vector.broadcast %246 : vector<2x1xf32> to vector<2x32xf32>
    %249 = vector.broadcast %247 : vector<1x32xf32> to vector<2x32xf32>
    %250 = arith.mulf %248, %249 : vector<2x32xf32>
    %251 = vector.extract_strided_slice %243 {offsets = [0, 1], sizes = [2, 1], strides = [1, 1]} : vector<2x8xf32> to vector<2x1xf32>
    %252 = vector.extract_strided_slice %16 {offsets = [1, 0], sizes = [1, 32], strides = [1, 1]} : vector<8x32xf32> to vector<1x32xf32>
    %253 = vector.broadcast %251 : vector<2x1xf32> to vector<2x32xf32>
    %254 = vector.broadcast %252 : vector<1x32xf32> to vector<2x32xf32>
    %255 = arith.mulf %253, %254 : vector<2x32xf32>
    %256 = arith.addf %250, %255 : vector<2x32xf32>
    %257 = vector.extract_strided_slice %243 {offsets = [0, 2], sizes = [2, 1], strides = [1, 1]} : vector<2x8xf32> to vector<2x1xf32>
    %258 = vector.extract_strided_slice %16 {offsets = [2, 0], sizes = [1, 32], strides = [1, 1]} : vector<8x32xf32> to vector<1x32xf32>
    %259 = vector.broadcast %257 : vector<2x1xf32> to vector<2x32xf32>
    %260 = vector.broadcast %258 : vector<1x32xf32> to vector<2x32xf32>
    %261 = arith.mulf %259, %260 : vector<2x32xf32>
    %262 = arith.addf %256, %261 : vector<2x32xf32>
    %263 = vector.extract_strided_slice %243 {offsets = [0, 3], sizes = [2, 1], strides = [1, 1]} : vector<2x8xf32> to vector<2x1xf32>
    %264 = vector.extract_strided_slice %16 {offsets = [3, 0], sizes = [1, 32], strides = [1, 1]} : vector<8x32xf32> to vector<1x32xf32>
    %265 = vector.broadcast %263 : vector<2x1xf32> to vector<2x32xf32>
    %266 = vector.broadcast %264 : vector<1x32xf32> to vector<2x32xf32>
    %267 = arith.mulf %265, %266 : vector<2x32xf32>
    %268 = arith.addf %262, %267 : vector<2x32xf32>
    %269 = vector.extract_strided_slice %243 {offsets = [0, 4], sizes = [2, 1], strides = [1, 1]} : vector<2x8xf32> to vector<2x1xf32>
    %270 = vector.extract_strided_slice %16 {offsets = [4, 0], sizes = [1, 32], strides = [1, 1]} : vector<8x32xf32> to vector<1x32xf32>
    %271 = vector.broadcast %269 : vector<2x1xf32> to vector<2x32xf32>
    %272 = vector.broadcast %270 : vector<1x32xf32> to vector<2x32xf32>
    %273 = arith.mulf %271, %272 : vector<2x32xf32>
    %274 = arith.addf %268, %273 : vector<2x32xf32>
    %275 = vector.extract_strided_slice %243 {offsets = [0, 5], sizes = [2, 1], strides = [1, 1]} : vector<2x8xf32> to vector<2x1xf32>
    %276 = vector.extract_strided_slice %16 {offsets = [5, 0], sizes = [1, 32], strides = [1, 1]} : vector<8x32xf32> to vector<1x32xf32>
    %277 = vector.broadcast %275 : vector<2x1xf32> to vector<2x32xf32>
    %278 = vector.broadcast %276 : vector<1x32xf32> to vector<2x32xf32>
    %279 = arith.mulf %277, %278 : vector<2x32xf32>
    %280 = arith.addf %274, %279 : vector<2x32xf32>
    %281 = vector.extract_strided_slice %243 {offsets = [0, 6], sizes = [2, 1], strides = [1, 1]} : vector<2x8xf32> to vector<2x1xf32>
    %282 = vector.extract_strided_slice %16 {offsets = [6, 0], sizes = [1, 32], strides = [1, 1]} : vector<8x32xf32> to vector<1x32xf32>
    %283 = vector.broadcast %281 : vector<2x1xf32> to vector<2x32xf32>
    %284 = vector.broadcast %282 : vector<1x32xf32> to vector<2x32xf32>
    %285 = arith.mulf %283, %284 : vector<2x32xf32>
    %286 = arith.addf %280, %285 : vector<2x32xf32>
    %287 = vector.extract_strided_slice %243 {offsets = [0, 7], sizes = [2, 1], strides = [1, 1]} : vector<2x8xf32> to vector<2x1xf32>
    %288 = vector.extract_strided_slice %16 {offsets = [7, 0], sizes = [1, 32], strides = [1, 1]} : vector<8x32xf32> to vector<1x32xf32>
    %289 = vector.broadcast %287 : vector<2x1xf32> to vector<2x32xf32>
    %290 = vector.broadcast %288 : vector<1x32xf32> to vector<2x32xf32>
    %291 = arith.mulf %289, %290 : vector<2x32xf32>
    %292 = arith.addf %286, %291 : vector<2x32xf32>
    %293 = arith.addf %245, %292 : vector<2x32xf32>
    %294 = vector.extract_strided_slice %293 {offsets = [0, 0], sizes = [2, 8], strides = [1, 1]} : vector<2x32xf32> to vector<2x8xf32>
    %295 = arith.negf %294 : vector<2x8xf32>
    %296 = math.exp %295 : vector<2x8xf32>
    %cst_29 = arith.constant 1.000000e+00 : f32
    %297 = vector.broadcast %cst_29 : f32 to vector<2x8xf32>
    %298 = arith.addf %297, %296 : vector<2x8xf32>
    %299 = arith.divf %297, %298 : vector<2x8xf32>
    %300 = vector.extract_strided_slice %293 {offsets = [0, 8], sizes = [2, 8], strides = [1, 1]} : vector<2x32xf32> to vector<2x8xf32>
    %301 = arith.negf %300 : vector<2x8xf32>
    %302 = math.exp %301 : vector<2x8xf32>
    %cst_30 = arith.constant 1.000000e+00 : f32
    %303 = vector.broadcast %cst_30 : f32 to vector<2x8xf32>
    %304 = arith.addf %303, %302 : vector<2x8xf32>
    %305 = arith.divf %303, %304 : vector<2x8xf32>
    %306 = vector.extract_strided_slice %293 {offsets = [0, 16], sizes = [2, 8], strides = [1, 1]} : vector<2x32xf32> to vector<2x8xf32>
    %307 = math.tanh %306 : vector<2x8xf32>
    %308 = vector.extract_strided_slice %293 {offsets = [0, 24], sizes = [2, 8], strides = [1, 1]} : vector<2x32xf32> to vector<2x8xf32>
    %309 = arith.negf %308 : vector<2x8xf32>
    %310 = math.exp %309 : vector<2x8xf32>
    %cst_31 = arith.constant 1.000000e+00 : f32
    %311 = vector.broadcast %cst_31 : f32 to vector<2x8xf32>
    %312 = arith.addf %311, %310 : vector<2x8xf32>
    %313 = arith.divf %311, %312 : vector<2x8xf32>
    %314 = arith.mulf %305, %241 : vector<2x8xf32>
    %315 = arith.mulf %299, %307 : vector<2x8xf32>
    %316 = arith.addf %314, %315 : vector<2x8xf32>
    %317 = math.tanh %316 : vector<2x8xf32>
    %318 = arith.mulf %313, %317 : vector<2x8xf32>
    %319 = vector.extract_strided_slice %15 {offsets = [0, 4, 0], sizes = [2, 1, 32], strides = [1, 1, 1]} : vector<2x8x32xf32> to vector<2x1x32xf32>
    %320 = vector.shape_cast %319 : vector<2x1x32xf32> to vector<2x32xf32>
    %321 = vector.extract_strided_slice %318 {offsets = [0, 0], sizes = [2, 1], strides = [1, 1]} : vector<2x8xf32> to vector<2x1xf32>
    %322 = vector.extract_strided_slice %16 {offsets = [0, 0], sizes = [1, 32], strides = [1, 1]} : vector<8x32xf32> to vector<1x32xf32>
    %323 = vector.broadcast %321 : vector<2x1xf32> to vector<2x32xf32>
    %324 = vector.broadcast %322 : vector<1x32xf32> to vector<2x32xf32>
    %325 = arith.mulf %323, %324 : vector<2x32xf32>
    %326 = vector.extract_strided_slice %318 {offsets = [0, 1], sizes = [2, 1], strides = [1, 1]} : vector<2x8xf32> to vector<2x1xf32>
    %327 = vector.extract_strided_slice %16 {offsets = [1, 0], sizes = [1, 32], strides = [1, 1]} : vector<8x32xf32> to vector<1x32xf32>
    %328 = vector.broadcast %326 : vector<2x1xf32> to vector<2x32xf32>
    %329 = vector.broadcast %327 : vector<1x32xf32> to vector<2x32xf32>
    %330 = arith.mulf %328, %329 : vector<2x32xf32>
    %331 = arith.addf %325, %330 : vector<2x32xf32>
    %332 = vector.extract_strided_slice %318 {offsets = [0, 2], sizes = [2, 1], strides = [1, 1]} : vector<2x8xf32> to vector<2x1xf32>
    %333 = vector.extract_strided_slice %16 {offsets = [2, 0], sizes = [1, 32], strides = [1, 1]} : vector<8x32xf32> to vector<1x32xf32>
    %334 = vector.broadcast %332 : vector<2x1xf32> to vector<2x32xf32>
    %335 = vector.broadcast %333 : vector<1x32xf32> to vector<2x32xf32>
    %336 = arith.mulf %334, %335 : vector<2x32xf32>
    %337 = arith.addf %331, %336 : vector<2x32xf32>
    %338 = vector.extract_strided_slice %318 {offsets = [0, 3], sizes = [2, 1], strides = [1, 1]} : vector<2x8xf32> to vector<2x1xf32>
    %339 = vector.extract_strided_slice %16 {offsets = [3, 0], sizes = [1, 32], strides = [1, 1]} : vector<8x32xf32> to vector<1x32xf32>
    %340 = vector.broadcast %338 : vector<2x1xf32> to vector<2x32xf32>
    %341 = vector.broadcast %339 : vector<1x32xf32> to vector<2x32xf32>
    %342 = arith.mulf %340, %341 : vector<2x32xf32>
    %343 = arith.addf %337, %342 : vector<2x32xf32>
    %344 = vector.extract_strided_slice %318 {offsets = [0, 4], sizes = [2, 1], strides = [1, 1]} : vector<2x8xf32> to vector<2x1xf32>
    %345 = vector.extract_strided_slice %16 {offsets = [4, 0], sizes = [1, 32], strides = [1, 1]} : vector<8x32xf32> to vector<1x32xf32>
    %346 = vector.broadcast %344 : vector<2x1xf32> to vector<2x32xf32>
    %347 = vector.broadcast %345 : vector<1x32xf32> to vector<2x32xf32>
    %348 = arith.mulf %346, %347 : vector<2x32xf32>
    %349 = arith.addf %343, %348 : vector<2x32xf32>
    %350 = vector.extract_strided_slice %318 {offsets = [0, 5], sizes = [2, 1], strides = [1, 1]} : vector<2x8xf32> to vector<2x1xf32>
    %351 = vector.extract_strided_slice %16 {offsets = [5, 0], sizes = [1, 32], strides = [1, 1]} : vector<8x32xf32> to vector<1x32xf32>
    %352 = vector.broadcast %350 : vector<2x1xf32> to vector<2x32xf32>
    %353 = vector.broadcast %351 : vector<1x32xf32> to vector<2x32xf32>
    %354 = arith.mulf %352, %353 : vector<2x32xf32>
    %355 = arith.addf %349, %354 : vector<2x32xf32>
    %356 = vector.extract_strided_slice %318 {offsets = [0, 6], sizes = [2, 1], strides = [1, 1]} : vector<2x8xf32> to vector<2x1xf32>
    %357 = vector.extract_strided_slice %16 {offsets = [6, 0], sizes = [1, 32], strides = [1, 1]} : vector<8x32xf32> to vector<1x32xf32>
    %358 = vector.broadcast %356 : vector<2x1xf32> to vector<2x32xf32>
    %359 = vector.broadcast %357 : vector<1x32xf32> to vector<2x32xf32>
    %360 = arith.mulf %358, %359 : vector<2x32xf32>
    %361 = arith.addf %355, %360 : vector<2x32xf32>
    %362 = vector.extract_strided_slice %318 {offsets = [0, 7], sizes = [2, 1], strides = [1, 1]} : vector<2x8xf32> to vector<2x1xf32>
    %363 = vector.extract_strided_slice %16 {offsets = [7, 0], sizes = [1, 32], strides = [1, 1]} : vector<8x32xf32> to vector<1x32xf32>
    %364 = vector.broadcast %362 : vector<2x1xf32> to vector<2x32xf32>
    %365 = vector.broadcast %363 : vector<1x32xf32> to vector<2x32xf32>
    %366 = arith.mulf %364, %365 : vector<2x32xf32>
    %367 = arith.addf %361, %366 : vector<2x32xf32>
    %368 = arith.addf %320, %367 : vector<2x32xf32>
    %369 = vector.extract_strided_slice %368 {offsets = [0, 0], sizes = [2, 8], strides = [1, 1]} : vector<2x32xf32> to vector<2x8xf32>
    %370 = arith.negf %369 : vector<2x8xf32>
    %371 = math.exp %370 : vector<2x8xf32>
    %cst_32 = arith.constant 1.000000e+00 : f32
    %372 = vector.broadcast %cst_32 : f32 to vector<2x8xf32>
    %373 = arith.addf %372, %371 : vector<2x8xf32>
    %374 = arith.divf %372, %373 : vector<2x8xf32>
    %375 = vector.extract_strided_slice %368 {offsets = [0, 8], sizes = [2, 8], strides = [1, 1]} : vector<2x32xf32> to vector<2x8xf32>
    %376 = arith.negf %375 : vector<2x8xf32>
    %377 = math.exp %376 : vector<2x8xf32>
    %cst_33 = arith.constant 1.000000e+00 : f32
    %378 = vector.broadcast %cst_33 : f32 to vector<2x8xf32>
    %379 = arith.addf %378, %377 : vector<2x8xf32>
    %380 = arith.divf %378, %379 : vector<2x8xf32>
    %381 = vector.extract_strided_slice %368 {offsets = [0, 16], sizes = [2, 8], strides = [1, 1]} : vector<2x32xf32> to vector<2x8xf32>
    %382 = math.tanh %381 : vector<2x8xf32>
    %383 = vector.extract_strided_slice %368 {offsets = [0, 24], sizes = [2, 8], strides = [1, 1]} : vector<2x32xf32> to vector<2x8xf32>
    %384 = arith.negf %383 : vector<2x8xf32>
    %385 = math.exp %384 : vector<2x8xf32>
    %cst_34 = arith.constant 1.000000e+00 : f32
    %386 = vector.broadcast %cst_34 : f32 to vector<2x8xf32>
    %387 = arith.addf %386, %385 : vector<2x8xf32>
    %388 = arith.divf %386, %387 : vector<2x8xf32>
    %389 = arith.mulf %380, %316 : vector<2x8xf32>
    %390 = arith.mulf %374, %382 : vector<2x8xf32>
    %391 = arith.addf %389, %390 : vector<2x8xf32>
    %392 = math.tanh %391 : vector<2x8xf32>
    %393 = arith.mulf %388, %392 : vector<2x8xf32>
    %394 = vector.extract_strided_slice %15 {offsets = [0, 5, 0], sizes = [2, 1, 32], strides = [1, 1, 1]} : vector<2x8x32xf32> to vector<2x1x32xf32>
    %395 = vector.shape_cast %394 : vector<2x1x32xf32> to vector<2x32xf32>
    %396 = vector.extract_strided_slice %393 {offsets = [0, 0], sizes = [2, 1], strides = [1, 1]} : vector<2x8xf32> to vector<2x1xf32>
    %397 = vector.extract_strided_slice %16 {offsets = [0, 0], sizes = [1, 32], strides = [1, 1]} : vector<8x32xf32> to vector<1x32xf32>
    %398 = vector.broadcast %396 : vector<2x1xf32> to vector<2x32xf32>
    %399 = vector.broadcast %397 : vector<1x32xf32> to vector<2x32xf32>
    %400 = arith.mulf %398, %399 : vector<2x32xf32>
    %401 = vector.extract_strided_slice %393 {offsets = [0, 1], sizes = [2, 1], strides = [1, 1]} : vector<2x8xf32> to vector<2x1xf32>
    %402 = vector.extract_strided_slice %16 {offsets = [1, 0], sizes = [1, 32], strides = [1, 1]} : vector<8x32xf32> to vector<1x32xf32>
    %403 = vector.broadcast %401 : vector<2x1xf32> to vector<2x32xf32>
    %404 = vector.broadcast %402 : vector<1x32xf32> to vector<2x32xf32>
    %405 = arith.mulf %403, %404 : vector<2x32xf32>
    %406 = arith.addf %400, %405 : vector<2x32xf32>
    %407 = vector.extract_strided_slice %393 {offsets = [0, 2], sizes = [2, 1], strides = [1, 1]} : vector<2x8xf32> to vector<2x1xf32>
    %408 = vector.extract_strided_slice %16 {offsets = [2, 0], sizes = [1, 32], strides = [1, 1]} : vector<8x32xf32> to vector<1x32xf32>
    %409 = vector.broadcast %407 : vector<2x1xf32> to vector<2x32xf32>
    %410 = vector.broadcast %408 : vector<1x32xf32> to vector<2x32xf32>
    %411 = arith.mulf %409, %410 : vector<2x32xf32>
    %412 = arith.addf %406, %411 : vector<2x32xf32>
    %413 = vector.extract_strided_slice %393 {offsets = [0, 3], sizes = [2, 1], strides = [1, 1]} : vector<2x8xf32> to vector<2x1xf32>
    %414 = vector.extract_strided_slice %16 {offsets = [3, 0], sizes = [1, 32], strides = [1, 1]} : vector<8x32xf32> to vector<1x32xf32>
    %415 = vector.broadcast %413 : vector<2x1xf32> to vector<2x32xf32>
    %416 = vector.broadcast %414 : vector<1x32xf32> to vector<2x32xf32>
    %417 = arith.mulf %415, %416 : vector<2x32xf32>
    %418 = arith.addf %412, %417 : vector<2x32xf32>
    %419 = vector.extract_strided_slice %393 {offsets = [0, 4], sizes = [2, 1], strides = [1, 1]} : vector<2x8xf32> to vector<2x1xf32>
    %420 = vector.extract_strided_slice %16 {offsets = [4, 0], sizes = [1, 32], strides = [1, 1]} : vector<8x32xf32> to vector<1x32xf32>
    %421 = vector.broadcast %419 : vector<2x1xf32> to vector<2x32xf32>
    %422 = vector.broadcast %420 : vector<1x32xf32> to vector<2x32xf32>
    %423 = arith.mulf %421, %422 : vector<2x32xf32>
    %424 = arith.addf %418, %423 : vector<2x32xf32>
    %425 = vector.extract_strided_slice %393 {offsets = [0, 5], sizes = [2, 1], strides = [1, 1]} : vector<2x8xf32> to vector<2x1xf32>
    %426 = vector.extract_strided_slice %16 {offsets = [5, 0], sizes = [1, 32], strides = [1, 1]} : vector<8x32xf32> to vector<1x32xf32>
    %427 = vector.broadcast %425 : vector<2x1xf32> to vector<2x32xf32>
    %428 = vector.broadcast %426 : vector<1x32xf32> to vector<2x32xf32>
    %429 = arith.mulf %427, %428 : vector<2x32xf32>
    %430 = arith.addf %424, %429 : vector<2x32xf32>
    %431 = vector.extract_strided_slice %393 {offsets = [0, 6], sizes = [2, 1], strides = [1, 1]} : vector<2x8xf32> to vector<2x1xf32>
    %432 = vector.extract_strided_slice %16 {offsets = [6, 0], sizes = [1, 32], strides = [1, 1]} : vector<8x32xf32> to vector<1x32xf32>
    %433 = vector.broadcast %431 : vector<2x1xf32> to vector<2x32xf32>
    %434 = vector.broadcast %432 : vector<1x32xf32> to vector<2x32xf32>
    %435 = arith.mulf %433, %434 : vector<2x32xf32>
    %436 = arith.addf %430, %435 : vector<2x32xf32>
    %437 = vector.extract_strided_slice %393 {offsets = [0, 7], sizes = [2, 1], strides = [1, 1]} : vector<2x8xf32> to vector<2x1xf32>
    %438 = vector.extract_strided_slice %16 {offsets = [7, 0], sizes = [1, 32], strides = [1, 1]} : vector<8x32xf32> to vector<1x32xf32>
    %439 = vector.broadcast %437 : vector<2x1xf32> to vector<2x32xf32>
    %440 = vector.broadcast %438 : vector<1x32xf32> to vector<2x32xf32>
    %441 = arith.mulf %439, %440 : vector<2x32xf32>
    %442 = arith.addf %436, %441 : vector<2x32xf32>
    %443 = arith.addf %395, %442 : vector<2x32xf32>
    %444 = vector.extract_strided_slice %443 {offsets = [0, 0], sizes = [2, 8], strides = [1, 1]} : vector<2x32xf32> to vector<2x8xf32>
    %445 = arith.negf %444 : vector<2x8xf32>
    %446 = math.exp %445 : vector<2x8xf32>
    %cst_35 = arith.constant 1.000000e+00 : f32
    %447 = vector.broadcast %cst_35 : f32 to vector<2x8xf32>
    %448 = arith.addf %447, %446 : vector<2x8xf32>
    %449 = arith.divf %447, %448 : vector<2x8xf32>
    %450 = vector.extract_strided_slice %443 {offsets = [0, 8], sizes = [2, 8], strides = [1, 1]} : vector<2x32xf32> to vector<2x8xf32>
    %451 = arith.negf %450 : vector<2x8xf32>
    %452 = math.exp %451 : vector<2x8xf32>
    %cst_36 = arith.constant 1.000000e+00 : f32
    %453 = vector.broadcast %cst_36 : f32 to vector<2x8xf32>
    %454 = arith.addf %453, %452 : vector<2x8xf32>
    %455 = arith.divf %453, %454 : vector<2x8xf32>
    %456 = vector.extract_strided_slice %443 {offsets = [0, 16], sizes = [2, 8], strides = [1, 1]} : vector<2x32xf32> to vector<2x8xf32>
    %457 = math.tanh %456 : vector<2x8xf32>
    %458 = vector.extract_strided_slice %443 {offsets = [0, 24], sizes = [2, 8], strides = [1, 1]} : vector<2x32xf32> to vector<2x8xf32>
    %459 = arith.negf %458 : vector<2x8xf32>
    %460 = math.exp %459 : vector<2x8xf32>
    %cst_37 = arith.constant 1.000000e+00 : f32
    %461 = vector.broadcast %cst_37 : f32 to vector<2x8xf32>
    %462 = arith.addf %461, %460 : vector<2x8xf32>
    %463 = arith.divf %461, %462 : vector<2x8xf32>
    %464 = arith.mulf %455, %391 : vector<2x8xf32>
    %465 = arith.mulf %449, %457 : vector<2x8xf32>
    %466 = arith.addf %464, %465 : vector<2x8xf32>
    %467 = math.tanh %466 : vector<2x8xf32>
    %468 = arith.mulf %463, %467 : vector<2x8xf32>
    %469 = vector.extract_strided_slice %15 {offsets = [0, 6, 0], sizes = [2, 1, 32], strides = [1, 1, 1]} : vector<2x8x32xf32> to vector<2x1x32xf32>
    %470 = vector.shape_cast %469 : vector<2x1x32xf32> to vector<2x32xf32>
    %471 = vector.extract_strided_slice %468 {offsets = [0, 0], sizes = [2, 1], strides = [1, 1]} : vector<2x8xf32> to vector<2x1xf32>
    %472 = vector.extract_strided_slice %16 {offsets = [0, 0], sizes = [1, 32], strides = [1, 1]} : vector<8x32xf32> to vector<1x32xf32>
    %473 = vector.broadcast %471 : vector<2x1xf32> to vector<2x32xf32>
    %474 = vector.broadcast %472 : vector<1x32xf32> to vector<2x32xf32>
    %475 = arith.mulf %473, %474 : vector<2x32xf32>
    %476 = vector.extract_strided_slice %468 {offsets = [0, 1], sizes = [2, 1], strides = [1, 1]} : vector<2x8xf32> to vector<2x1xf32>
    %477 = vector.extract_strided_slice %16 {offsets = [1, 0], sizes = [1, 32], strides = [1, 1]} : vector<8x32xf32> to vector<1x32xf32>
    %478 = vector.broadcast %476 : vector<2x1xf32> to vector<2x32xf32>
    %479 = vector.broadcast %477 : vector<1x32xf32> to vector<2x32xf32>
    %480 = arith.mulf %478, %479 : vector<2x32xf32>
    %481 = arith.addf %475, %480 : vector<2x32xf32>
    %482 = vector.extract_strided_slice %468 {offsets = [0, 2], sizes = [2, 1], strides = [1, 1]} : vector<2x8xf32> to vector<2x1xf32>
    %483 = vector.extract_strided_slice %16 {offsets = [2, 0], sizes = [1, 32], strides = [1, 1]} : vector<8x32xf32> to vector<1x32xf32>
    %484 = vector.broadcast %482 : vector<2x1xf32> to vector<2x32xf32>
    %485 = vector.broadcast %483 : vector<1x32xf32> to vector<2x32xf32>
    %486 = arith.mulf %484, %485 : vector<2x32xf32>
    %487 = arith.addf %481, %486 : vector<2x32xf32>
    %488 = vector.extract_strided_slice %468 {offsets = [0, 3], sizes = [2, 1], strides = [1, 1]} : vector<2x8xf32> to vector<2x1xf32>
    %489 = vector.extract_strided_slice %16 {offsets = [3, 0], sizes = [1, 32], strides = [1, 1]} : vector<8x32xf32> to vector<1x32xf32>
    %490 = vector.broadcast %488 : vector<2x1xf32> to vector<2x32xf32>
    %491 = vector.broadcast %489 : vector<1x32xf32> to vector<2x32xf32>
    %492 = arith.mulf %490, %491 : vector<2x32xf32>
    %493 = arith.addf %487, %492 : vector<2x32xf32>
    %494 = vector.extract_strided_slice %468 {offsets = [0, 4], sizes = [2, 1], strides = [1, 1]} : vector<2x8xf32> to vector<2x1xf32>
    %495 = vector.extract_strided_slice %16 {offsets = [4, 0], sizes = [1, 32], strides = [1, 1]} : vector<8x32xf32> to vector<1x32xf32>
    %496 = vector.broadcast %494 : vector<2x1xf32> to vector<2x32xf32>
    %497 = vector.broadcast %495 : vector<1x32xf32> to vector<2x32xf32>
    %498 = arith.mulf %496, %497 : vector<2x32xf32>
    %499 = arith.addf %493, %498 : vector<2x32xf32>
    %500 = vector.extract_strided_slice %468 {offsets = [0, 5], sizes = [2, 1], strides = [1, 1]} : vector<2x8xf32> to vector<2x1xf32>
    %501 = vector.extract_strided_slice %16 {offsets = [5, 0], sizes = [1, 32], strides = [1, 1]} : vector<8x32xf32> to vector<1x32xf32>
    %502 = vector.broadcast %500 : vector<2x1xf32> to vector<2x32xf32>
    %503 = vector.broadcast %501 : vector<1x32xf32> to vector<2x32xf32>
    %504 = arith.mulf %502, %503 : vector<2x32xf32>
    %505 = arith.addf %499, %504 : vector<2x32xf32>
    %506 = vector.extract_strided_slice %468 {offsets = [0, 6], sizes = [2, 1], strides = [1, 1]} : vector<2x8xf32> to vector<2x1xf32>
    %507 = vector.extract_strided_slice %16 {offsets = [6, 0], sizes = [1, 32], strides = [1, 1]} : vector<8x32xf32> to vector<1x32xf32>
    %508 = vector.broadcast %506 : vector<2x1xf32> to vector<2x32xf32>
    %509 = vector.broadcast %507 : vector<1x32xf32> to vector<2x32xf32>
    %510 = arith.mulf %508, %509 : vector<2x32xf32>
    %511 = arith.addf %505, %510 : vector<2x32xf32>
    %512 = vector.extract_strided_slice %468 {offsets = [0, 7], sizes = [2, 1], strides = [1, 1]} : vector<2x8xf32> to vector<2x1xf32>
    %513 = vector.extract_strided_slice %16 {offsets = [7, 0], sizes = [1, 32], strides = [1, 1]} : vector<8x32xf32> to vector<1x32xf32>
    %514 = vector.broadcast %512 : vector<2x1xf32> to vector<2x32xf32>
    %515 = vector.broadcast %513 : vector<1x32xf32> to vector<2x32xf32>
    %516 = arith.mulf %514, %515 : vector<2x32xf32>
    %517 = arith.addf %511, %516 : vector<2x32xf32>
    %518 = arith.addf %470, %517 : vector<2x32xf32>
    %519 = vector.extract_strided_slice %518 {offsets = [0, 0], sizes = [2, 8], strides = [1, 1]} : vector<2x32xf32> to vector<2x8xf32>
    %520 = arith.negf %519 : vector<2x8xf32>
    %521 = math.exp %520 : vector<2x8xf32>
    %cst_38 = arith.constant 1.000000e+00 : f32
    %522 = vector.broadcast %cst_38 : f32 to vector<2x8xf32>
    %523 = arith.addf %522, %521 : vector<2x8xf32>
    %524 = arith.divf %522, %523 : vector<2x8xf32>
    %525 = vector.extract_strided_slice %518 {offsets = [0, 8], sizes = [2, 8], strides = [1, 1]} : vector<2x32xf32> to vector<2x8xf32>
    %526 = arith.negf %525 : vector<2x8xf32>
    %527 = math.exp %526 : vector<2x8xf32>
    %cst_39 = arith.constant 1.000000e+00 : f32
    %528 = vector.broadcast %cst_39 : f32 to vector<2x8xf32>
    %529 = arith.addf %528, %527 : vector<2x8xf32>
    %530 = arith.divf %528, %529 : vector<2x8xf32>
    %531 = vector.extract_strided_slice %518 {offsets = [0, 16], sizes = [2, 8], strides = [1, 1]} : vector<2x32xf32> to vector<2x8xf32>
    %532 = math.tanh %531 : vector<2x8xf32>
    %533 = vector.extract_strided_slice %518 {offsets = [0, 24], sizes = [2, 8], strides = [1, 1]} : vector<2x32xf32> to vector<2x8xf32>
    %534 = arith.negf %533 : vector<2x8xf32>
    %535 = math.exp %534 : vector<2x8xf32>
    %cst_40 = arith.constant 1.000000e+00 : f32
    %536 = vector.broadcast %cst_40 : f32 to vector<2x8xf32>
    %537 = arith.addf %536, %535 : vector<2x8xf32>
    %538 = arith.divf %536, %537 : vector<2x8xf32>
    %539 = arith.mulf %530, %466 : vector<2x8xf32>
    %540 = arith.mulf %524, %532 : vector<2x8xf32>
    %541 = arith.addf %539, %540 : vector<2x8xf32>
    %542 = math.tanh %541 : vector<2x8xf32>
    %543 = arith.mulf %538, %542 : vector<2x8xf32>
    %544 = vector.extract_strided_slice %15 {offsets = [0, 7, 0], sizes = [2, 1, 32], strides = [1, 1, 1]} : vector<2x8x32xf32> to vector<2x1x32xf32>
    %545 = vector.shape_cast %544 : vector<2x1x32xf32> to vector<2x32xf32>
    %546 = vector.extract_strided_slice %543 {offsets = [0, 0], sizes = [2, 1], strides = [1, 1]} : vector<2x8xf32> to vector<2x1xf32>
    %547 = vector.extract_strided_slice %16 {offsets = [0, 0], sizes = [1, 32], strides = [1, 1]} : vector<8x32xf32> to vector<1x32xf32>
    %548 = vector.broadcast %546 : vector<2x1xf32> to vector<2x32xf32>
    %549 = vector.broadcast %547 : vector<1x32xf32> to vector<2x32xf32>
    %550 = arith.mulf %548, %549 : vector<2x32xf32>
    %551 = vector.extract_strided_slice %543 {offsets = [0, 1], sizes = [2, 1], strides = [1, 1]} : vector<2x8xf32> to vector<2x1xf32>
    %552 = vector.extract_strided_slice %16 {offsets = [1, 0], sizes = [1, 32], strides = [1, 1]} : vector<8x32xf32> to vector<1x32xf32>
    %553 = vector.broadcast %551 : vector<2x1xf32> to vector<2x32xf32>
    %554 = vector.broadcast %552 : vector<1x32xf32> to vector<2x32xf32>
    %555 = arith.mulf %553, %554 : vector<2x32xf32>
    %556 = arith.addf %550, %555 : vector<2x32xf32>
    %557 = vector.extract_strided_slice %543 {offsets = [0, 2], sizes = [2, 1], strides = [1, 1]} : vector<2x8xf32> to vector<2x1xf32>
    %558 = vector.extract_strided_slice %16 {offsets = [2, 0], sizes = [1, 32], strides = [1, 1]} : vector<8x32xf32> to vector<1x32xf32>
    %559 = vector.broadcast %557 : vector<2x1xf32> to vector<2x32xf32>
    %560 = vector.broadcast %558 : vector<1x32xf32> to vector<2x32xf32>
    %561 = arith.mulf %559, %560 : vector<2x32xf32>
    %562 = arith.addf %556, %561 : vector<2x32xf32>
    %563 = vector.extract_strided_slice %543 {offsets = [0, 3], sizes = [2, 1], strides = [1, 1]} : vector<2x8xf32> to vector<2x1xf32>
    %564 = vector.extract_strided_slice %16 {offsets = [3, 0], sizes = [1, 32], strides = [1, 1]} : vector<8x32xf32> to vector<1x32xf32>
    %565 = vector.broadcast %563 : vector<2x1xf32> to vector<2x32xf32>
    %566 = vector.broadcast %564 : vector<1x32xf32> to vector<2x32xf32>
    %567 = arith.mulf %565, %566 : vector<2x32xf32>
    %568 = arith.addf %562, %567 : vector<2x32xf32>
    %569 = vector.extract_strided_slice %543 {offsets = [0, 4], sizes = [2, 1], strides = [1, 1]} : vector<2x8xf32> to vector<2x1xf32>
    %570 = vector.extract_strided_slice %16 {offsets = [4, 0], sizes = [1, 32], strides = [1, 1]} : vector<8x32xf32> to vector<1x32xf32>
    %571 = vector.broadcast %569 : vector<2x1xf32> to vector<2x32xf32>
    %572 = vector.broadcast %570 : vector<1x32xf32> to vector<2x32xf32>
    %573 = arith.mulf %571, %572 : vector<2x32xf32>
    %574 = arith.addf %568, %573 : vector<2x32xf32>
    %575 = vector.extract_strided_slice %543 {offsets = [0, 5], sizes = [2, 1], strides = [1, 1]} : vector<2x8xf32> to vector<2x1xf32>
    %576 = vector.extract_strided_slice %16 {offsets = [5, 0], sizes = [1, 32], strides = [1, 1]} : vector<8x32xf32> to vector<1x32xf32>
    %577 = vector.broadcast %575 : vector<2x1xf32> to vector<2x32xf32>
    %578 = vector.broadcast %576 : vector<1x32xf32> to vector<2x32xf32>
    %579 = arith.mulf %577, %578 : vector<2x32xf32>
    %580 = arith.addf %574, %579 : vector<2x32xf32>
    %581 = vector.extract_strided_slice %543 {offsets = [0, 6], sizes = [2, 1], strides = [1, 1]} : vector<2x8xf32> to vector<2x1xf32>
    %582 = vector.extract_strided_slice %16 {offsets = [6, 0], sizes = [1, 32], strides = [1, 1]} : vector<8x32xf32> to vector<1x32xf32>
    %583 = vector.broadcast %581 : vector<2x1xf32> to vector<2x32xf32>
    %584 = vector.broadcast %582 : vector<1x32xf32> to vector<2x32xf32>
    %585 = arith.mulf %583, %584 : vector<2x32xf32>
    %586 = arith.addf %580, %585 : vector<2x32xf32>
    %587 = vector.extract_strided_slice %543 {offsets = [0, 7], sizes = [2, 1], strides = [1, 1]} : vector<2x8xf32> to vector<2x1xf32>
    %588 = vector.extract_strided_slice %16 {offsets = [7, 0], sizes = [1, 32], strides = [1, 1]} : vector<8x32xf32> to vector<1x32xf32>
    %589 = vector.broadcast %587 : vector<2x1xf32> to vector<2x32xf32>
    %590 = vector.broadcast %588 : vector<1x32xf32> to vector<2x32xf32>
    %591 = arith.mulf %589, %590 : vector<2x32xf32>
    %592 = arith.addf %586, %591 : vector<2x32xf32>
    %593 = arith.addf %545, %592 : vector<2x32xf32>
    %594 = vector.extract_strided_slice %593 {offsets = [0, 0], sizes = [2, 8], strides = [1, 1]} : vector<2x32xf32> to vector<2x8xf32>
    %595 = arith.negf %594 : vector<2x8xf32>
    %596 = math.exp %595 : vector<2x8xf32>
    %cst_41 = arith.constant 1.000000e+00 : f32
    %597 = vector.broadcast %cst_41 : f32 to vector<2x8xf32>
    %598 = arith.addf %597, %596 : vector<2x8xf32>
    %599 = arith.divf %597, %598 : vector<2x8xf32>
    %600 = vector.extract_strided_slice %593 {offsets = [0, 8], sizes = [2, 8], strides = [1, 1]} : vector<2x32xf32> to vector<2x8xf32>
    %601 = arith.negf %600 : vector<2x8xf32>
    %602 = math.exp %601 : vector<2x8xf32>
    %cst_42 = arith.constant 1.000000e+00 : f32
    %603 = vector.broadcast %cst_42 : f32 to vector<2x8xf32>
    %604 = arith.addf %603, %602 : vector<2x8xf32>
    %605 = arith.divf %603, %604 : vector<2x8xf32>
    %606 = vector.extract_strided_slice %593 {offsets = [0, 16], sizes = [2, 8], strides = [1, 1]} : vector<2x32xf32> to vector<2x8xf32>
    %607 = math.tanh %606 : vector<2x8xf32>
    %608 = vector.extract_strided_slice %593 {offsets = [0, 24], sizes = [2, 8], strides = [1, 1]} : vector<2x32xf32> to vector<2x8xf32>
    %609 = arith.negf %608 : vector<2x8xf32>
    %610 = math.exp %609 : vector<2x8xf32>
    %cst_43 = arith.constant 1.000000e+00 : f32
    %611 = vector.broadcast %cst_43 : f32 to vector<2x8xf32>
    %612 = arith.addf %611, %610 : vector<2x8xf32>
    %613 = arith.divf %611, %612 : vector<2x8xf32>
    %614 = arith.mulf %605, %541 : vector<2x8xf32>
    %615 = arith.mulf %599, %607 : vector<2x8xf32>
    %616 = arith.addf %614, %615 : vector<2x8xf32>
    %617 = math.tanh %616 : vector<2x8xf32>
    %618 = arith.mulf %613, %617 : vector<2x8xf32>
    %c0_44 = arith.constant 0 : index
    %c0_45 = arith.constant 0 : index
    %619 = vector.load %arg10[%c0_44, %c0_45] : memref<2x8xf32, #tpu.memory_space<vmem>>, vector<2x8xf32>
    tpu.vector_store %arg10[%c0_44, %c0_45], %618 {strides = array<i32>} : memref<2x8xf32, #tpu.memory_space<vmem>>, vector<2x8xf32>,
    %c0_46 = arith.constant 0 : index
    %c0_47 = arith.constant 0 : index
    %620 = vector.load %arg11[%c0_46, %c0_47] : memref<2x8xf32, #tpu.memory_space<vmem>>, vector<2x8xf32>
    tpu.vector_store %arg11[%c0_46, %c0_47], %616 {strides = array<i32>} : memref<2x8xf32, #tpu.memory_space<vmem>>, vector<2x8xf32>,
    %c0_i32_48 = arith.constant 0 : i32
    %621 = arith.cmpi eq, %arg1, %c0_i32_48 : i32
    %622 = arith.extui %621 : i1 to i32
    %c0_i32_49 = arith.constant 0 : i32
    %623 = arith.cmpi ne, %622, %c0_i32_49 : i32
    scf.if %623 {
      %c0_50 = arith.constant 0 : index
      %c0_51 = arith.constant 0 : index
      %624 = vector.load %arg6[%c0_50, %c0_51] : memref<1x8xf32, #tpu.memory_space<vmem>>, vector<1x8xf32>
      %625 = vector.broadcast %624 : vector<1x8xf32> to vector<2x8xf32>
      %626 = arith.mulf %618, %625 : vector<2x8xf32>
      %cst_52 = arith.constant dense<0.000000e+00> : vector<2xf32>
      %627 = vector.multi_reduction <add>, %626, %cst_52 [1] : vector<2x8xf32> to vector<2xf32>
      %628 = vector.shape_cast %627 : vector<2xf32> to vector<2x1xf32>
      %c0_53 = arith.constant 0 : index
      %c0_54 = arith.constant 0 : index
      %629 = vector.load %arg7[%c0_53, %c0_54] : memref<1x1xf32, #tpu.memory_space<vmem>>, vector<1x1xf32>
      %630 = vector.broadcast %629 : vector<1x1xf32> to vector<2x1xf32>
      %631 = arith.addf %628, %630 : vector<2x1xf32>
      %c0_55 = arith.constant 0 : index
      %c0_56 = arith.constant 0 : index
      %632 = vector.load %arg8[%c0_55, %c0_56] : memref<2x1xf32, #tpu.memory_space<vmem>>, vector<2x1xf32>
      tpu.vector_store %arg8[%c0_55, %c0_56], %631 {strides = array<i32>} : memref<2x1xf32, #tpu.memory_space<vmem>>, vector<2x1xf32>,
    } else {
    }
    return
  }
  func.func @transform_0(%arg0: i32, %arg1: i32) -> (i32, i32, i32) {
    %c0_i32 = arith.constant 0 : i32
    %c0_i32_0 = arith.constant 0 : i32
    return %arg0, %arg1, %c0_i32 : i32, i32, i32
  }
  func.func @transform_1(%arg0: i32, %arg1: i32) -> (i32, i32) {
    %c0_i32 = arith.constant 0 : i32
    %c0_i32_0 = arith.constant 0 : i32
    %c0_i32_1 = arith.constant 0 : i32
    return %c0_i32, %c0_i32_0 : i32, i32
  }
  func.func @transform_2(%arg0: i32, %arg1: i32) -> (i32, i32) {
    %c0_i32 = arith.constant 0 : i32
    %c0_i32_0 = arith.constant 0 : i32
    %c0_i32_1 = arith.constant 0 : i32
    return %c0_i32, %c0_i32_0 : i32, i32
  }
  func.func @transform_3(%arg0: i32, %arg1: i32) -> (i32, i32) {
    %c0_i32 = arith.constant 0 : i32
    %c0_i32_0 = arith.constant 0 : i32
    %c0_i32_1 = arith.constant 0 : i32
    return %c0_i32, %c0_i32_0 : i32, i32
  }
  func.func @transform_4(%arg0: i32, %arg1: i32) -> (i32, i32) {
    %c0_i32 = arith.constant 0 : i32
    %c0_i32_0 = arith.constant 0 : i32
    %c0_i32_1 = arith.constant 0 : i32
    return %c0_i32, %c0_i32_0 : i32, i32
  }
  func.func @transform_5(%arg0: i32, %arg1: i32) -> (i32, i32) {
    %c0_i32 = arith.constant 0 : i32
    %c0_i32_0 = arith.constant 0 : i32
    %c0_i32_1 = arith.constant 0 : i32
    return %c0_i32, %c0_i32_0 : i32, i32
  }
  func.func @transform_6(%arg0: i32, %arg1: i32) -> (i32, i32) {
    %c0_i32 = arith.constant 0 : i32
    %c0_i32_0 = arith.constant 0 : i32
    return %arg0, %c0_i32 : i32, i32
  }
}

</mosaic_0001>

<llo_original>
// kernel: tpu_custom_call.1
$region0: #{tpu_custom_call.1}
  #allocation0 [shape = 'u32[]', space=smem, size = 0x4, offset = 0x4, fixed_abs, tag = 'smem constant byte address 0x4 - core index']
  #allocation1 [shape = 'u32[144,128]{1,0:T(1,128)}', space=vmem, size = 0x12000, scoped, tag = 'internal scratch']
  #allocation2 [shape = 'f32[16,128]{1,0:T(8,128)}', space=vmem, size = 0x2000, scoped, tag = 'scratch operand']
  #allocation3 [shape = 'f32[2,8]{1,0:T(2,128)}', space=vmem, size = 0x400, scoped, tag = 'scratch operand']
  #allocation4 [shape = 'f32[2,8]{1,0:T(2,128)}', space=vmem, size = 0x400, scoped, tag = 'scratch operand']
  #allocation5 [shape = 'f32[1,1]{1,0:T(1,128)S(1)}', space=vmem, size = 0x200, scoped, tag = 'scoped memory for tpu_custom_call.1']
  %s0 = inlined_call_operand.vmem [shape: f32[2,8,125], index: 0, kind: input, shape index: {}]
  %s1 = inlined_call_operand.vmem [shape: f32[128,32], index: 1, kind: input, shape index: {}]
  %s2 = inlined_call_operand.vmem [shape: f32[1,32], index: 2, kind: input, shape index: {}]
  %s3 = inlined_call_operand.vmem [shape: f32[8,32], index: 3, kind: input, shape index: {}]
  %s4 = inlined_call_operand.vmem [shape: f32[1,8], index: 4, kind: input, shape index: {}]
  %s5 = inlined_call_operand.<no memory space> [shape: f32[1,1], index: 5, kind: input, shape index: {}]
  %s6 = inlined_call_operand.vmem [shape: f32[2,1], index: 6, kind: output, shape index: {}]
  %s7 = sld [smem:[#allocation0]]
  $region42: #{tpu_custom_call.1} parent=0
    _
  %s9 = ssub.s32 1, %s7
  %s10 = scalar_select 0, %s9, %s7
  %v11 = vstv %s5
  %12 = vst [vmem:[#allocation5] sm:$0x1] %v11
  // Predicated region
  $region2: #{tpu_custom_call.1} parent=0 // pred_check
    _
  $region3: #{tpu_custom_call.1} parent=0 // pred_check_branch
    %14 = sbr.rel (0) target = $region5
  $region4: #{tpu_custom_call.1} parent=0 // pred_region
    _
  $region5: #{tpu_custom_call.1} parent=0 // pred_fallthru
    _
  // Predicated region
  $region6: #{tpu_custom_call.1} parent=0 // pred_check
    _
  $region7: #{tpu_custom_call.1} parent=0 // pred_check_branch
    %16 = sbr.rel (0) target = $region9
  $region8: #{tpu_custom_call.1} parent=0 // pred_region
    _
  $region9: #{tpu_custom_call.1} parent=0 // pred_fallthru
    _
  // Predicated region
  $region10: #{tpu_custom_call.1} parent=0 // pred_check
    _
  $region11: #{tpu_custom_call.1} parent=0 // pred_check_branch
    %18 = sbr.rel (0) target = $region13
  $region12: #{tpu_custom_call.1} parent=0 // pred_region
    _
  $region13: #{tpu_custom_call.1} parent=0 // pred_fallthru
    _
  // Predicated region
  $region14: #{tpu_custom_call.1} parent=0 // pred_check
    _
  $region15: #{tpu_custom_call.1} parent=0 // pred_check_branch
    %20 = sbr.rel (0) target = $region17
  $region16: #{tpu_custom_call.1} parent=0 // pred_region
    _
  $region17: #{tpu_custom_call.1} parent=0 // pred_fallthru
    _
  // Predicated region
  $region18: #{tpu_custom_call.1} parent=0 // pred_check
    _
  $region19: #{tpu_custom_call.1} parent=0 // pred_check_branch
    %22 = sbr.rel (0) target = $region21
  $region20: #{tpu_custom_call.1} parent=0 // pred_region
    _
  $region21: #{tpu_custom_call.1} parent=0 // pred_fallthru
    _
  // Predicated region
  $region22: #{tpu_custom_call.1} parent=0 // pred_check
    _
  $region23: #{tpu_custom_call.1} parent=0 // pred_check_branch
    %24 = sbr.rel (0) target = $region25
  $region24: #{tpu_custom_call.1} parent=0 // pred_region
    _
  $region25: #{tpu_custom_call.1} parent=0 // pred_fallthru
    _
  %p25 = scmp.eq.s32.totalorder 0, 0
  // Predicated region
  $region26: #{tpu_custom_call.1} parent=0 // pred_check
    %p26 = pneg %p25
  $region27: #{tpu_custom_call.1} parent=0 // pred_check_branch
    %28 = sbr.rel (%p26) target = $region29
  $region28: #{tpu_custom_call.1} parent=0 // pred_region
    %vm29 = vcmask 58368
    %30 = vst.msk [vmem:[#allocation3] sm:$0x3] %vm29, 0.0
    %31 = vst.msk [vmem:[#allocation4] sm:$0x3] %vm29, 0.0
    %32 = vst [vmem:[#allocation2] sm:$0xff] 0.0
    %33 = vst [vmem:[#allocation2 + $0x8] sm:$0xff] 0.0
  $region29: #{tpu_custom_call.1} parent=0 // pred_fallthru
    _
  %v34 = vld [vmem:[%s0] sm:$0xff]
  %vm35 = vcmask 1022976
  %36 = vst.msk [vmem:[#allocation2] sm:$0xff] %vm35, %v34
  %s37 = scalar_lea.vmem %s0, 8
  %v38 = vld [vmem:[%s37] sm:$0xff]
  %39 = vst.msk [vmem:[#allocation2 + $0x8] sm:$0xff] %vm35, %v38
  %v40 = vld [vmem:[#allocation2] sm:$0xff]
  %v41 = vld [vmem:[#allocation2 + $0x8] sm:$0xff]
  %v42 = vld [vmem:[%s1] sm:$0xff]
  %v43 = vld [vmem:[%s1 + $0x8] sm:$0xff]
  %v44 = vld [vmem:[%s1 + $0x10] sm:$0xff]
  %v45 = vld [vmem:[%s1 + $0x18] sm:$0xff]
  %v46 = vld [vmem:[%s1 + $0x20] sm:$0xff]
  %v47 = vld [vmem:[%s1 + $0x28] sm:$0xff]
  %v48 = vld [vmem:[%s1 + $0x30] sm:$0xff]
  %v49 = vld [vmem:[%s1 + $0x38] sm:$0xff]
  %v50 = vld [vmem:[%s1 + $0x40] sm:$0xff]
  %v51 = vld [vmem:[%s1 + $0x48] sm:$0xff]
  %v52 = vld [vmem:[%s1 + $0x50] sm:$0xff]
  %v53 = vld [vmem:[%s1 + $0x58] sm:$0xff]
  %v54 = vld [vmem:[%s1 + $0x60] sm:$0xff]
  %v55 = vld [vmem:[%s1 + $0x68] sm:$0xff]
  %v56 = vld [vmem:[%s1 + $0x70] sm:$0xff]
  %v57 = vld [vmem:[%s1 + $0x78] sm:$0xff]
  %v58 = vld [vmem:[%s2] sm:$0x1]
  %v60 = vlaneseq
  %v61 = vshrl.u32 %v60, 7
  %v62 = vsub.s32 0, %v61
  %v63 = vrot.slane %v58, %v62
  %65 = vmatprep.subr.mxu0 0.0
  %66 = vmatpush1.msra.mxu0 %v42
  %67 = vmatprep.subr.mxu0 0.0
  %68 = vmatpush1.msra.mxu0 %v43
  %69 = vmatprep.subr.mxu0 0.0
  %70 = vmatpush1.msra.mxu0 %v44
  %71 = vmatprep.subr.mxu0 0.0
  %72 = vmatpush1.msra.mxu0 %v45
  %73 = vmatprep.subr.mxu0 0.0
  %74 = vmatpush1.msra.mxu0 %v46
  %75 = vmatprep.subr.mxu0 0.0
  %76 = vmatpush1.msra.mxu0 %v47
  %77 = vmatprep.subr.mxu0 0.0
  %78 = vmatpush1.msra.mxu0 %v48
  %79 = vmatprep.subr.mxu0 0.0
  %80 = vmatpush1.msra.mxu0 %v49
  %81 = vmatprep.subr.mxu0 0.0
  %82 = vmatpush1.msra.mxu0 %v50
  %83 = vmatprep.subr.mxu0 0.0
  %84 = vmatpush1.msra.mxu0 %v51
  %85 = vmatprep.subr.mxu0 0.0
  %86 = vmatpush1.msra.mxu0 %v52
  %87 = vmatprep.subr.mxu0 0.0
  %88 = vmatpush1.msra.mxu0 %v53
  %89 = vmatprep.subr.mxu0 0.0
  %90 = vmatpush1.msra.mxu0 %v54
  %91 = vmatprep.subr.mxu0 0.0
  %92 = vmatpush1.msra.mxu0 %v55
  %93 = vmatprep.subr.mxu0 0.0
  %94 = vmatpush1.msra.mxu0 %v56
  %95 = vmatprep.subr.mxu0 0.0
  %96 = vmatpush1.msra.mxu0 %v57
  %97 = vmatprep.subr.mxu0 0.0
  %98 = vmatpush1.msra.mxu0 0.0
  %99 = vmatprep.subr.mxu0 0.0
  %100 = vmatpush1.msra.mxu0 0.0
  %101 = vmatprep.subr.mxu0 0.0
  %102 = vmatpush1.msra.mxu0 0.0
  %103 = vmatprep.subr.mxu0 0.0
  %104 = vmatpush1.msra.mxu0 0.0
  %105 = vmatprep.subr.mxu0 0.0
  %106 = vmatpush1.msra.mxu0 0.0
  %107 = vmatprep.subr.mxu0 0.0
  %108 = vmatpush1.msra.mxu0 0.0
  %109 = vmatprep.subr.mxu0 0.0
  %110 = vmatpush1.msra.mxu0 0.0
  %111 = vmatprep.subr.mxu0 0.0
  %112 = vmatpush1.msra.mxu0 0.0
  %113 = vmatprep.subr.mxu0 0.0
  %114 = vmatpush1.msra.mxu0 0.0
  %115 = vmatprep.subr.mxu0 0.0
  %116 = vmatpush1.msra.mxu0 0.0
  %117 = vmatprep.subr.mxu0 0.0
  %118 = vmatpush1.msra.mxu0 0.0
  %119 = vmatprep.subr.mxu0 0.0
  %120 = vmatpush1.msra.mxu0 0.0
  %121 = vmatprep.subr.mxu0 0.0
  %122 = vmatpush1.msra.mxu0 0.0
  %123 = vmatprep.subr.mxu0 0.0
  %124 = vmatpush1.msra.mxu0 0.0
  %125 = vmatprep.subr.mxu0 0.0
  %126 = vmatpush1.msra.mxu0 0.0
  %127 = vmatprep.subr.mxu0 0.0
  %128 = vmatpush1.msra.mxu0 0.0
  %129 = vmatprep.mubr.f32.mxu0 0.0
  %130 = vmatmul.mubr.f32.gmra.mrb[0].mxu0 %v40
  %v131 = vpop.f32.mrb[0].mxu0
  %v132 = vadd.f32 %v63, %v131
  %v133 = vpop.f32.mrb[0].mxu0
  %134 = vmatprep.mubr.f32.mxu0 0.0
  %135 = vmatmul.mubr.f32.gmra.mrb[0].mxu0 %v41
  %v136 = vpop.f32.mrb[0].mxu0
  %v137 = vadd.f32 %v63, %v136
  %v138 = vpop.f32.mrb[0].mxu0
  %139 = vdwg.mxu0
  %v140 = vld [vmem:[%s3] sm:$0xff]
  %v141 = vld [vmem:[#allocation3] sm:$0x3]
  %v142 = vld [vmem:[#allocation4] sm:$0x3]
  %144 = vset.pattern.permute.xlu0 0
  %145 = vperm.xlu0 %144, %v141
  %v146 = vpop.permute.xlu0 %145
  %v148 = vlaneseq
  %v149 = vshrl.u32 %v148, 7
  %v150 = vsub.s32 0, %v149
  %v151 = vrot.slane %v140, %v150
  %v152 = vmul.f32 %v146, %v151
  %153 = vset.pattern.permute.xlu0 1
  %154 = vperm.xlu0 %153, %v141
  %v155 = vpop.permute.xlu0 %154
  %v157 = vlaneseq
  %v158 = vshrl.u32 %v157, 7
  %v159 = vsub.s32 1, %v158
  %v160 = vrot.slane %v140, %v159
  %v161 = vmul.f32 %v155, %v160
  %v162 = vadd.f32 %v152, %v161
  %163 = vset.pattern.permute.xlu0 2
  %164 = vperm.xlu0 %163, %v141
  %v165 = vpop.permute.xlu0 %164
  %v167 = vlaneseq
  %v168 = vshrl.u32 %v167, 7
  %v169 = vsub.s32 2, %v168
  %v170 = vrot.slane %v140, %v169
  %v171 = vmul.f32 %v165, %v170
  %v172 = vadd.f32 %v162, %v171
  %173 = vset.pattern.permute.xlu0 3
  %174 = vperm.xlu0 %173, %v141
  %v175 = vpop.permute.xlu0 %174
  %v177 = vlaneseq
  %v178 = vshrl.u32 %v177, 7
  %v179 = vsub.s32 3, %v178
  %v180 = vrot.slane %v140, %v179
  %v181 = vmul.f32 %v175, %v180
  %v182 = vadd.f32 %v172, %v181
  %183 = vset.pattern.permute.xlu0 4
  %184 = vperm.xlu0 %183, %v141
  %v185 = vpop.permute.xlu0 %184
  %v187 = vlaneseq
  %v188 = vshrl.u32 %v187, 7
  %v189 = vsub.s32 4, %v188
  %v190 = vrot.slane %v140, %v189
  %v191 = vmul.f32 %v185, %v190
  %v192 = vadd.f32 %v182, %v191
  %193 = vset.pattern.permute.xlu0 5
  %194 = vperm.xlu0 %193, %v141
  %v195 = vpop.permute.xlu0 %194
  %v197 = vlaneseq
  %v198 = vshrl.u32 %v197, 7
  %v199 = vsub.s32 5, %v198
  %v200 = vrot.slane %v140, %v199
  %v201 = vmul.f32 %v195, %v200
  %v202 = vadd.f32 %v192, %v201
  %203 = vset.pattern.permute.xlu0 6
  %204 = vperm.xlu0 %203, %v141
  %v205 = vpop.permute.xlu0 %204
  %v207 = vlaneseq
  %v208 = vshrl.u32 %v207, 7
  %v209 = vsub.s32 6, %v208
  %v210 = vrot.slane %v140, %v209
  %v211 = vmul.f32 %v205, %v210
  %v212 = vadd.f32 %v202, %v211
  %213 = vset.pattern.permute.xlu0 7
  %214 = vperm.xlu0 %213, %v141
  %v215 = vpop.permute.xlu0 %214
  %v217 = vlaneseq
  %v218 = vshrl.u32 %v217, 7
  %v219 = vsub.s32 7, %v218
  %v220 = vrot.slane %v140, %v219
  %v221 = vmul.f32 %v215, %v220
  %v222 = vadd.f32 %v212, %v221
  %v224 = vrot.slane %v222, 1
  %v227 = vadd.f32 %v132, %v222
  %v228 = vadd.f32 %v137, %v224
  %v229 = vxor.u32 %v227, 2147483648
  %v230 = vxor.u32 %v228, 2147483648
  %v231 = vmul.f32 %v229, 1.442695
  %v232 = vpow.pop %v231
  %v233 = vmul.f32 %v230, 1.442695
  %v234 = vpow.pop %v233
  %v235 = vadd.f32 %v232, 1.0
  %v236 = vadd.f32 %v234, 1.0
  %v237 = vrcp.pop %v235
  %v238 = vmul.f32 1.0, %v237
  %v239 = vrcp.pop %v236
  %v240 = vmul.f32 1.0, %v239
  %v241 = vtanh.pop %v227
  %v242 = vtanh.pop %v228
  %v244 = vrot.slane %v142, 1
  %245 = vrot.lane.b32.xlu0 %v142, 8
  %v246 = vpop.permute.xlu0 %245
  %247 = vrot.lane.b32.xlu0 %v244, 8
  %v248 = vpop.permute.xlu0 %247
  %v251 = vmul.f32 %v238, %v246
  %v252 = vmul.f32 %v240, %v248
  %255 = vrot.lane.b32.xlu0 %v241, 112
  %v256 = vpop.permute.xlu0 %255
  %257 = vrot.lane.b32.xlu0 %v242, 112
  %v258 = vpop.permute.xlu0 %257
  %v261 = vmul.f32 %v238, %v256
  %v262 = vmul.f32 %v240, %v258
  %265 = vrot.lane.b32.xlu0 %v261, 8
  %v266 = vpop.permute.xlu0 %265
  %267 = vrot.lane.b32.xlu0 %v262, 8
  %v268 = vpop.permute.xlu0 %267
  %v271 = vadd.f32 %v251, %v266
  %v272 = vadd.f32 %v252, %v268
  %v273 = vtanh.pop %v271
  %v274 = vtanh.pop %v272
  %277 = vrot.lane.b32.xlu0 %v273, 16
  %v278 = vpop.permute.xlu0 %277
  %279 = vrot.lane.b32.xlu0 %v274, 16
  %v280 = vpop.permute.xlu0 %279
  %v283 = vmul.f32 %v238, %v278
  %v284 = vmul.f32 %v240, %v280
  %286 = vset.pattern.permute.xlu0 24
  %287 = vperm.xlu0 %286, %v283
  %v288 = vpop.permute.xlu0 %287
  %291 = vset.pattern.permute.xlu0 24
  %292 = vperm.xlu0 %291, %v284
  %v293 = vpop.permute.xlu0 %292
  %v295 = vmul.f32 %v288, %v151
  %v296 = vmul.f32 %v293, %v151
  %297 = vset.pattern.permute.xlu0 25
  %298 = vperm.xlu0 %297, %v283
  %v299 = vpop.permute.xlu0 %298
  %301 = vset.pattern.permute.xlu0 25
  %302 = vperm.xlu0 %301, %v284
  %v303 = vpop.permute.xlu0 %302
  %v305 = vmul.f32 %v299, %v160
  %v306 = vmul.f32 %v303, %v160
  %v307 = vadd.f32 %v295, %v305
  %v308 = vadd.f32 %v296, %v306
  %309 = vset.pattern.permute.xlu0 26
  %310 = vperm.xlu0 %309, %v283
  %v311 = vpop.permute.xlu0 %310
  %313 = vset.pattern.permute.xlu0 26
  %314 = vperm.xlu0 %313, %v284
  %v315 = vpop.permute.xlu0 %314
  %v317 = vmul.f32 %v311, %v170
  %v318 = vmul.f32 %v315, %v170
  %v319 = vadd.f32 %v307, %v317
  %v320 = vadd.f32 %v308, %v318
  %321 = vset.pattern.permute.xlu0 27
  %322 = vperm.xlu0 %321, %v283
  %v323 = vpop.permute.xlu0 %322
  %325 = vset.pattern.permute.xlu0 27
  %326 = vperm.xlu0 %325, %v284
  %v327 = vpop.permute.xlu0 %326
  %v329 = vmul.f32 %v323, %v180
  %v330 = vmul.f32 %v327, %v180
  %v331 = vadd.f32 %v319, %v329
  %v332 = vadd.f32 %v320, %v330
  %333 = vset.pattern.permute.xlu0 28
  %334 = vperm.xlu0 %333, %v283
  %v335 = vpop.permute.xlu0 %334
  %337 = vset.pattern.permute.xlu0 28
  %338 = vperm.xlu0 %337, %v284
  %v339 = vpop.permute.xlu0 %338
  %v341 = vmul.f32 %v335, %v190
  %v342 = vmul.f32 %v339, %v190
  %v343 = vadd.f32 %v331, %v341
  %v344 = vadd.f32 %v332, %v342
  %345 = vset.pattern.permute.xlu0 29
  %346 = vperm.xlu0 %345, %v283
  %v347 = vpop.permute.xlu0 %346
  %349 = vset.pattern.permute.xlu0 29
  %350 = vperm.xlu0 %349, %v284
  %v351 = vpop.permute.xlu0 %350
  %v353 = vmul.f32 %v347, %v200
  %v354 = vmul.f32 %v351, %v200
  %v355 = vadd.f32 %v343, %v353
  %v356 = vadd.f32 %v344, %v354
  %357 = vset.pattern.permute.xlu0 30
  %358 = vperm.xlu0 %357, %v283
  %v359 = vpop.permute.xlu0 %358
  %361 = vset.pattern.permute.xlu0 30
  %362 = vperm.xlu0 %361, %v284
  %v363 = vpop.permute.xlu0 %362
  %v365 = vmul.f32 %v359, %v210
  %v366 = vmul.f32 %v363, %v210
  %v367 = vadd.f32 %v355, %v365
  %v368 = vadd.f32 %v356, %v366
  %369 = vset.pattern.permute.xlu0 31
  %370 = vperm.xlu0 %369, %v283
  %v371 = vpop.permute.xlu0 %370
  %373 = vset.pattern.permute.xlu0 31
  %374 = vperm.xlu0 %373, %v284
  %v375 = vpop.permute.xlu0 %374
  %v377 = vmul.f32 %v371, %v220
  %v378 = vmul.f32 %v375, %v220
  %v379 = vadd.f32 %v367, %v377
  %v380 = vadd.f32 %v368, %v378
  %v383 = vrot.slane %v379, 7
  %v384 = vrot.slane %v380, 7
  %v387 = vadd.f32 %v132, %v383
  %v388 = vadd.f32 %v137, %v384
  %v389 = vxor.u32 %v387, 2147483648
  %v390 = vxor.u32 %v388, 2147483648
  %v391 = vmul.f32 %v389, 1.442695
  %v392 = vpow.pop %v391
  %v393 = vmul.f32 %v390, 1.442695
  %v394 = vpow.pop %v393
  %v395 = vadd.f32 %v392, 1.0
  %v396 = vadd.f32 %v394, 1.0
  %v397 = vrcp.pop %v395
  %v398 = vmul.f32 1.0, %v397
  %v399 = vrcp.pop %v396
  %v400 = vmul.f32 1.0, %v399
  %v401 = vtanh.pop %v387
  %v402 = vtanh.pop %v388
  %v405 = vrot.slane %v271, 7
  %v406 = vrot.slane %v272, 7
  %v409 = vmul.f32 %v398, %v405
  %v410 = vmul.f32 %v400, %v406
  %413 = vrot.lane.b32.xlu0 %v401, 112
  %v414 = vpop.permute.xlu0 %413
  %415 = vrot.lane.b32.xlu0 %v402, 112
  %v416 = vpop.permute.xlu0 %415
  %v419 = vmul.f32 %v398, %v414
  %v420 = vmul.f32 %v400, %v416
  %423 = vrot.lane.b32.xlu0 %v419, 8
  %v424 = vpop.permute.xlu0 %423
  %425 = vrot.lane.b32.xlu0 %v420, 8
  %v426 = vpop.permute.xlu0 %425
  %v429 = vadd.f32 %v409, %v424
  %v430 = vadd.f32 %v410, %v426
  %v431 = vtanh.pop %v429
  %v432 = vtanh.pop %v430
  %435 = vrot.lane.b32.xlu0 %v431, 16
  %v436 = vpop.permute.xlu0 %435
  %437 = vrot.lane.b32.xlu0 %v432, 16
  %v438 = vpop.permute.xlu0 %437
  %v441 = vmul.f32 %v398, %v436
  %v442 = vmul.f32 %v400, %v438
  %444 = vset.pattern.permute.xlu0 24
  %445 = vperm.xlu0 %444, %v441
  %v446 = vpop.permute.xlu0 %445
  %449 = vset.pattern.permute.xlu0 24
  %450 = vperm.xlu0 %449, %v442
  %v451 = vpop.permute.xlu0 %450
  %v453 = vmul.f32 %v446, %v151
  %v454 = vmul.f32 %v451, %v151
  %455 = vset.pattern.permute.xlu0 25
  %456 = vperm.xlu0 %455, %v441
  %v457 = vpop.permute.xlu0 %456
  %459 = vset.pattern.permute.xlu0 25
  %460 = vperm.xlu0 %459, %v442
  %v461 = vpop.permute.xlu0 %460
  %v463 = vmul.f32 %v457, %v160
  %v464 = vmul.f32 %v461, %v160
  %v465 = vadd.f32 %v453, %v463
  %v466 = vadd.f32 %v454, %v464
  %467 = vset.pattern.permute.xlu0 26
  %468 = vperm.xlu0 %467, %v441
  %v469 = vpop.permute.xlu0 %468
  %471 = vset.pattern.permute.xlu0 26
  %472 = vperm.xlu0 %471, %v442
  %v473 = vpop.permute.xlu0 %472
  %v475 = vmul.f32 %v469, %v170
  %v476 = vmul.f32 %v473, %v170
  %v477 = vadd.f32 %v465, %v475
  %v478 = vadd.f32 %v466, %v476
  %479 = vset.pattern.permute.xlu0 27
  %480 = vperm.xlu0 %479, %v441
  %v481 = vpop.permute.xlu0 %480
  %483 = vset.pattern.permute.xlu0 27
  %484 = vperm.xlu0 %483, %v442
  %v485 = vpop.permute.xlu0 %484
  %v487 = vmul.f32 %v481, %v180
  %v488 = vmul.f32 %v485, %v180
  %v489 = vadd.f32 %v477, %v487
  %v490 = vadd.f32 %v478, %v488
  %491 = vset.pattern.permute.xlu0 28
  %492 = vperm.xlu0 %491, %v441
  %v493 = vpop.permute.xlu0 %492
  %495 = vset.pattern.permute.xlu0 28
  %496 = vperm.xlu0 %495, %v442
  %v497 = vpop.permute.xlu0 %496
  %v499 = vmul.f32 %v493, %v190
  %v500 = vmul.f32 %v497, %v190
  %v501 = vadd.f32 %v489, %v499
  %v502 = vadd.f32 %v490, %v500
  %503 = vset.pattern.permute.xlu0 29
  %504 = vperm.xlu0 %503, %v441
  %v505 = vpop.permute.xlu0 %504
  %507 = vset.pattern.permute.xlu0 29
  %508 = vperm.xlu0 %507, %v442
  %v509 = vpop.permute.xlu0 %508
  %v511 = vmul.f32 %v505, %v200
  %v512 = vmul.f32 %v509, %v200
  %v513 = vadd.f32 %v501, %v511
  %v514 = vadd.f32 %v502, %v512
  %515 = vset.pattern.permute.xlu0 30
  %516 = vperm.xlu0 %515, %v441
  %v517 = vpop.permute.xlu0 %516
  %519 = vset.pattern.permute.xlu0 30
  %520 = vperm.xlu0 %519, %v442
  %v521 = vpop.permute.xlu0 %520
  %v523 = vmul.f32 %v517, %v210
  %v524 = vmul.f32 %v521, %v210
  %v525 = vadd.f32 %v513, %v523
  %v526 = vadd.f32 %v514, %v524
  %527 = vset.pattern.permute.xlu0 31
  %528 = vperm.xlu0 %527, %v441
  %v529 = vpop.permute.xlu0 %528
  %531 = vset.pattern.permute.xlu0 31
  %532 = vperm.xlu0 %531, %v442
  %v533 = vpop.permute.xlu0 %532
  %v535 = vmul.f32 %v529, %v220
  %v536 = vmul.f32 %v533, %v220
  %v537 = vadd.f32 %v525, %v535
  %v538 = vadd.f32 %v526, %v536
  %v541 = vrot.slane %v537, 7
  %v542 = vrot.slane %v538, 7
  %v545 = vadd.f32 %v132, %v541
  %v546 = vadd.f32 %v137, %v542
  %v547 = vxor.u32 %v545, 2147483648
  %v548 = vxor.u32 %v546, 2147483648
  %v549 = vmul.f32 %v547, 1.442695
  %v550 = vpow.pop %v549
  %v551 = vmul.f32 %v548, 1.442695
  %v552 = vpow.pop %v551
  %v553 = vadd.f32 %v550, 1.0
  %v554 = vadd.f32 %v552, 1.0
  %v555 = vrcp.pop %v553
  %v556 = vmul.f32 1.0, %v555
  %v557 = vrcp.pop %v554
  %v558 = vmul.f32 1.0, %v557
  %v559 = vtanh.pop %v545
  %v560 = vtanh.pop %v546
  %v563 = vrot.slane %v429, 7
  %v564 = vrot.slane %v430, 7
  %v567 = vmul.f32 %v556, %v563
  %v568 = vmul.f32 %v558, %v564
  %571 = vrot.lane.b32.xlu0 %v559, 112
  %v572 = vpop.permute.xlu0 %571
  %573 = vrot.lane.b32.xlu0 %v560, 112
  %v574 = vpop.permute.xlu0 %573
  %v577 = vmul.f32 %v556, %v572
  %v578 = vmul.f32 %v558, %v574
  %581 = vrot.lane.b32.xlu0 %v577, 8
  %v582 = vpop.permute.xlu0 %581
  %583 = vrot.lane.b32.xlu0 %v578, 8
  %v584 = vpop.permute.xlu0 %583
  %v587 = vadd.f32 %v567, %v582
  %v588 = vadd.f32 %v568, %v584
  %v589 = vtanh.pop %v587
  %v590 = vtanh.pop %v588
  %593 = vrot.lane.b32.xlu0 %v589, 16
  %v594 = vpop.permute.xlu0 %593
  %595 = vrot.lane.b32.xlu0 %v590, 16
  %v596 = vpop.permute.xlu0 %595
  %v599 = vmul.f32 %v556, %v594
  %v600 = vmul.f32 %v558, %v596
  %602 = vset.pattern.permute.xlu0 24
  %603 = vperm.xlu0 %602, %v599
  %v604 = vpop.permute.xlu0 %603
  %607 = vset.pattern.permute.xlu0 24
  %608 = vperm.xlu0 %607, %v600
  %v609 = vpop.permute.xlu0 %608
  %v611 = vmul.f32 %v604, %v151
  %v612 = vmul.f32 %v609, %v151
  %613 = vset.pattern.permute.xlu0 25
  %614 = vperm.xlu0 %613, %v599
  %v615 = vpop.permute.xlu0 %614
  %617 = vset.pattern.permute.xlu0 25
  %618 = vperm.xlu0 %617, %v600
  %v619 = vpop.permute.xlu0 %618
  %v621 = vmul.f32 %v615, %v160
  %v622 = vmul.f32 %v619, %v160
  %v623 = vadd.f32 %v611, %v621
  %v624 = vadd.f32 %v612, %v622
  %625 = vset.pattern.permute.xlu0 26
  %626 = vperm.xlu0 %625, %v599
  %v627 = vpop.permute.xlu0 %626
  %629 = vset.pattern.permute.xlu0 26
  %630 = vperm.xlu0 %629, %v600
  %v631 = vpop.permute.xlu0 %630
  %v633 = vmul.f32 %v627, %v170
  %v634 = vmul.f32 %v631, %v170
  %v635 = vadd.f32 %v623, %v633
  %v636 = vadd.f32 %v624, %v634
  %637 = vset.pattern.permute.xlu0 27
  %638 = vperm.xlu0 %637, %v599
  %v639 = vpop.permute.xlu0 %638
  %641 = vset.pattern.permute.xlu0 27
  %642 = vperm.xlu0 %641, %v600
  %v643 = vpop.permute.xlu0 %642
  %v645 = vmul.f32 %v639, %v180
  %v646 = vmul.f32 %v643, %v180
  %v647 = vadd.f32 %v635, %v645
  %v648 = vadd.f32 %v636, %v646
  %649 = vset.pattern.permute.xlu0 28
  %650 = vperm.xlu0 %649, %v599
  %v651 = vpop.permute.xlu0 %650
  %653 = vset.pattern.permute.xlu0 28
  %654 = vperm.xlu0 %653, %v600
  %v655 = vpop.permute.xlu0 %654
  %v657 = vmul.f32 %v651, %v190
  %v658 = vmul.f32 %v655, %v190
  %v659 = vadd.f32 %v647, %v657
  %v660 = vadd.f32 %v648, %v658
  %661 = vset.pattern.permute.xlu0 29
  %662 = vperm.xlu0 %661, %v599
  %v663 = vpop.permute.xlu0 %662
  %665 = vset.pattern.permute.xlu0 29
  %666 = vperm.xlu0 %665, %v600
  %v667 = vpop.permute.xlu0 %666
  %v669 = vmul.f32 %v663, %v200
  %v670 = vmul.f32 %v667, %v200
  %v671 = vadd.f32 %v659, %v669
  %v672 = vadd.f32 %v660, %v670
  %673 = vset.pattern.permute.xlu0 30
  %674 = vperm.xlu0 %673, %v599
  %v675 = vpop.permute.xlu0 %674
  %677 = vset.pattern.permute.xlu0 30
  %678 = vperm.xlu0 %677, %v600
  %v679 = vpop.permute.xlu0 %678
  %v681 = vmul.f32 %v675, %v210
  %v682 = vmul.f32 %v679, %v210
  %v683 = vadd.f32 %v671, %v681
  %v684 = vadd.f32 %v672, %v682
  %685 = vset.pattern.permute.xlu0 31
  %686 = vperm.xlu0 %685, %v599
  %v687 = vpop.permute.xlu0 %686
  %689 = vset.pattern.permute.xlu0 31
  %690 = vperm.xlu0 %689, %v600
  %v691 = vpop.permute.xlu0 %690
  %v693 = vmul.f32 %v687, %v220
  %v694 = vmul.f32 %v691, %v220
  %v695 = vadd.f32 %v683, %v693
  %v696 = vadd.f32 %v684, %v694
  %v699 = vrot.slane %v695, 7
  %v700 = vrot.slane %v696, 7
  %v703 = vadd.f32 %v132, %v699
  %v704 = vadd.f32 %v137, %v700
  %v705 = vxor.u32 %v703, 2147483648
  %v706 = vxor.u32 %v704, 2147483648
  %v707 = vmul.f32 %v705, 1.442695
  %v708 = vpow.pop %v707
  %v709 = vmul.f32 %v706, 1.442695
  %v710 = vpow.pop %v709
  %v711 = vadd.f32 %v708, 1.0
  %v712 = vadd.f32 %v710, 1.0
  %v713 = vrcp.pop %v711
  %v714 = vmul.f32 1.0, %v713
  %v715 = vrcp.pop %v712
  %v716 = vmul.f32 1.0, %v715
  %v717 = vtanh.pop %v703
  %v718 = vtanh.pop %v704
  %v721 = vrot.slane %v587, 7
  %v722 = vrot.slane %v588, 7
  %v725 = vmul.f32 %v714, %v721
  %v726 = vmul.f32 %v716, %v722
  %729 = vrot.lane.b32.xlu0 %v717, 112
  %v730 = vpop.permute.xlu0 %729
  %731 = vrot.lane.b32.xlu0 %v718, 112
  %v732 = vpop.permute.xlu0 %731
  %v735 = vmul.f32 %v714, %v730
  %v736 = vmul.f32 %v716, %v732
  %739 = vrot.lane.b32.xlu0 %v735, 8
  %v740 = vpop.permute.xlu0 %739
  %741 = vrot.lane.b32.xlu0 %v736, 8
  %v742 = vpop.permute.xlu0 %741
  %v745 = vadd.f32 %v725, %v740
  %v746 = vadd.f32 %v726, %v742
  %v747 = vtanh.pop %v745
  %v748 = vtanh.pop %v746
  %751 = vrot.lane.b32.xlu0 %v747, 16
  %v752 = vpop.permute.xlu0 %751
  %753 = vrot.lane.b32.xlu0 %v748, 16
  %v754 = vpop.permute.xlu0 %753
  %v757 = vmul.f32 %v714, %v752
  %v758 = vmul.f32 %v716, %v754
  %760 = vset.pattern.permute.xlu0 24
  %761 = vperm.xlu0 %760, %v757
  %v762 = vpop.permute.xlu0 %761
  %765 = vset.pattern.permute.xlu0 24
  %766 = vperm.xlu0 %765, %v758
  %v767 = vpop.permute.xlu0 %766
  %v769 = vmul.f32 %v762, %v151
  %v770 = vmul.f32 %v767, %v151
  %771 = vset.pattern.permute.xlu0 25
  %772 = vperm.xlu0 %771, %v757
  %v773 = vpop.permute.xlu0 %772
  %775 = vset.pattern.permute.xlu0 25
  %776 = vperm.xlu0 %775, %v758
  %v777 = vpop.permute.xlu0 %776
  %v779 = vmul.f32 %v773, %v160
  %v780 = vmul.f32 %v777, %v160
  %v781 = vadd.f32 %v769, %v779
  %v782 = vadd.f32 %v770, %v780
  %783 = vset.pattern.permute.xlu0 26
  %784 = vperm.xlu0 %783, %v757
  %v785 = vpop.permute.xlu0 %784
  %787 = vset.pattern.permute.xlu0 26
  %788 = vperm.xlu0 %787, %v758
  %v789 = vpop.permute.xlu0 %788
  %v791 = vmul.f32 %v785, %v170
  %v792 = vmul.f32 %v789, %v170
  %v793 = vadd.f32 %v781, %v791
  %v794 = vadd.f32 %v782, %v792
  %795 = vset.pattern.permute.xlu0 27
  %796 = vperm.xlu0 %795, %v757
  %v797 = vpop.permute.xlu0 %796
  %799 = vset.pattern.permute.xlu0 27
  %800 = vperm.xlu0 %799, %v758
  %v801 = vpop.permute.xlu0 %800
  %v803 = vmul.f32 %v797, %v180
  %v804 = vmul.f32 %v801, %v180
  %v805 = vadd.f32 %v793, %v803
  %v806 = vadd.f32 %v794, %v804
  %807 = vset.pattern.permute.xlu0 28
  %808 = vperm.xlu0 %807, %v757
  %v809 = vpop.permute.xlu0 %808
  %811 = vset.pattern.permute.xlu0 28
  %812 = vperm.xlu0 %811, %v758
  %v813 = vpop.permute.xlu0 %812
  %v815 = vmul.f32 %v809, %v190
  %v816 = vmul.f32 %v813, %v190
  %v817 = vadd.f32 %v805, %v815
  %v818 = vadd.f32 %v806, %v816
  %819 = vset.pattern.permute.xlu0 29
  %820 = vperm.xlu0 %819, %v757
  %v821 = vpop.permute.xlu0 %820
  %823 = vset.pattern.permute.xlu0 29
  %824 = vperm.xlu0 %823, %v758
  %v825 = vpop.permute.xlu0 %824
  %v827 = vmul.f32 %v821, %v200
  %v828 = vmul.f32 %v825, %v200
  %v829 = vadd.f32 %v817, %v827
  %v830 = vadd.f32 %v818, %v828
  %831 = vset.pattern.permute.xlu0 30
  %832 = vperm.xlu0 %831, %v757
  %v833 = vpop.permute.xlu0 %832
  %835 = vset.pattern.permute.xlu0 30
  %836 = vperm.xlu0 %835, %v758
  %v837 = vpop.permute.xlu0 %836
  %v839 = vmul.f32 %v833, %v210
  %v840 = vmul.f32 %v837, %v210
  %v841 = vadd.f32 %v829, %v839
  %v842 = vadd.f32 %v830, %v840
  %843 = vset.pattern.permute.xlu0 31
  %844 = vperm.xlu0 %843, %v757
  %v845 = vpop.permute.xlu0 %844
  %847 = vset.pattern.permute.xlu0 31
  %848 = vperm.xlu0 %847, %v758
  %v849 = vpop.permute.xlu0 %848
  %v851 = vmul.f32 %v845, %v220
  %v852 = vmul.f32 %v849, %v220
  %v853 = vadd.f32 %v841, %v851
  %v854 = vadd.f32 %v842, %v852
  %v857 = vrot.slane %v853, 7
  %v858 = vrot.slane %v854, 7
  %v861 = vadd.f32 %v132, %v857
  %v862 = vadd.f32 %v137, %v858
  %v863 = vxor.u32 %v861, 2147483648
  %v864 = vxor.u32 %v862, 2147483648
  %v865 = vmul.f32 %v863, 1.442695
  %v866 = vpow.pop %v865
  %v867 = vmul.f32 %v864, 1.442695
  %v868 = vpow.pop %v867
  %v869 = vadd.f32 %v866, 1.0
  %v870 = vadd.f32 %v868, 1.0
  %v871 = vrcp.pop %v869
  %v872 = vmul.f32 1.0, %v871
  %v873 = vrcp.pop %v870
  %v874 = vmul.f32 1.0, %v873
  %v875 = vtanh.pop %v861
  %v876 = vtanh.pop %v862
  %v879 = vrot.slane %v745, 7
  %v880 = vrot.slane %v746, 7
  %v883 = vmul.f32 %v872, %v879
  %v884 = vmul.f32 %v874, %v880
  %887 = vrot.lane.b32.xlu0 %v875, 112
  %v888 = vpop.permute.xlu0 %887
  %889 = vrot.lane.b32.xlu0 %v876, 112
  %v890 = vpop.permute.xlu0 %889
  %v893 = vmul.f32 %v872, %v888
  %v894 = vmul.f32 %v874, %v890
  %897 = vrot.lane.b32.xlu0 %v893, 8
  %v898 = vpop.permute.xlu0 %897
  %899 = vrot.lane.b32.xlu0 %v894, 8
  %v900 = vpop.permute.xlu0 %899
  %v903 = vadd.f32 %v883, %v898
  %v904 = vadd.f32 %v884, %v900
  %v905 = vtanh.pop %v903
  %v906 = vtanh.pop %v904
  %909 = vrot.lane.b32.xlu0 %v905, 16
  %v910 = vpop.permute.xlu0 %909
  %911 = vrot.lane.b32.xlu0 %v906, 16
  %v912 = vpop.permute.xlu0 %911
  %v915 = vmul.f32 %v872, %v910
  %v916 = vmul.f32 %v874, %v912
  %918 = vset.pattern.permute.xlu0 24
  %919 = vperm.xlu0 %918, %v915
  %v920 = vpop.permute.xlu0 %919
  %923 = vset.pattern.permute.xlu0 24
  %924 = vperm.xlu0 %923, %v916
  %v925 = vpop.permute.xlu0 %924
  %v927 = vmul.f32 %v920, %v151
  %v928 = vmul.f32 %v925, %v151
  %929 = vset.pattern.permute.xlu0 25
  %930 = vperm.xlu0 %929, %v915
  %v931 = vpop.permute.xlu0 %930
  %933 = vset.pattern.permute.xlu0 25
  %934 = vperm.xlu0 %933, %v916
  %v935 = vpop.permute.xlu0 %934
  %v937 = vmul.f32 %v931, %v160
  %v938 = vmul.f32 %v935, %v160
  %v939 = vadd.f32 %v927, %v937
  %v940 = vadd.f32 %v928, %v938
  %941 = vset.pattern.permute.xlu0 26
  %942 = vperm.xlu0 %941, %v915
  %v943 = vpop.permute.xlu0 %942
  %945 = vset.pattern.permute.xlu0 26
  %946 = vperm.xlu0 %945, %v916
  %v947 = vpop.permute.xlu0 %946
  %v949 = vmul.f32 %v943, %v170
  %v950 = vmul.f32 %v947, %v170
  %v951 = vadd.f32 %v939, %v949
  %v952 = vadd.f32 %v940, %v950
  %953 = vset.pattern.permute.xlu0 27
  %954 = vperm.xlu0 %953, %v915
  %v955 = vpop.permute.xlu0 %954
  %957 = vset.pattern.permute.xlu0 27
  %958 = vperm.xlu0 %957, %v916
  %v959 = vpop.permute.xlu0 %958
  %v961 = vmul.f32 %v955, %v180
  %v962 = vmul.f32 %v959, %v180
  %v963 = vadd.f32 %v951, %v961
  %v964 = vadd.f32 %v952, %v962
  %965 = vset.pattern.permute.xlu0 28
  %966 = vperm.xlu0 %965, %v915
  %v967 = vpop.permute.xlu0 %966
  %969 = vset.pattern.permute.xlu0 28
  %970 = vperm.xlu0 %969, %v916
  %v971 = vpop.permute.xlu0 %970
  %v973 = vmul.f32 %v967, %v190
  %v974 = vmul.f32 %v971, %v190
  %v975 = vadd.f32 %v963, %v973
  %v976 = vadd.f32 %v964, %v974
  %977 = vset.pattern.permute.xlu0 29
  %978 = vperm.xlu0 %977, %v915
  %v979 = vpop.permute.xlu0 %978
  %981 = vset.pattern.permute.xlu0 29
  %982 = vperm.xlu0 %981, %v916
  %v983 = vpop.permute.xlu0 %982
  %v985 = vmul.f32 %v979, %v200
  %v986 = vmul.f32 %v983, %v200
  %v987 = vadd.f32 %v975, %v985
  %v988 = vadd.f32 %v976, %v986
  %989 = vset.pattern.permute.xlu0 30
  %990 = vperm.xlu0 %989, %v915
  %v991 = vpop.permute.xlu0 %990
  %993 = vset.pattern.permute.xlu0 30
  %994 = vperm.xlu0 %993, %v916
  %v995 = vpop.permute.xlu0 %994
  %v997 = vmul.f32 %v991, %v210
  %v998 = vmul.f32 %v995, %v210
  %v999 = vadd.f32 %v987, %v997
  %v1000 = vadd.f32 %v988, %v998
  %1001 = vset.pattern.permute.xlu0 31
  %1002 = vperm.xlu0 %1001, %v915
  %v1003 = vpop.permute.xlu0 %1002
  %1005 = vset.pattern.permute.xlu0 31
  %1006 = vperm.xlu0 %1005, %v916
  %v1007 = vpop.permute.xlu0 %1006
  %v1009 = vmul.f32 %v1003, %v220
  %v1010 = vmul.f32 %v1007, %v220
  %v1011 = vadd.f32 %v999, %v1009
  %v1012 = vadd.f32 %v1000, %v1010
  %v1015 = vrot.slane %v1011, 7
  %v1016 = vrot.slane %v1012, 7
  %v1019 = vadd.f32 %v132, %v1015
  %v1020 = vadd.f32 %v137, %v1016
  %v1021 = vxor.u32 %v1019, 2147483648
  %v1022 = vxor.u32 %v1020, 2147483648
  %v1023 = vmul.f32 %v1021, 1.442695
  %v1024 = vpow.pop %v1023
  %v1025 = vmul.f32 %v1022, 1.442695
  %v1026 = vpow.pop %v1025
  %v1027 = vadd.f32 %v1024, 1.0
  %v1028 = vadd.f32 %v1026, 1.0
  %v1029 = vrcp.pop %v1027
  %v1030 = vmul.f32 1.0, %v1029
  %v1031 = vrcp.pop %v1028
  %v1032 = vmul.f32 1.0, %v1031
  %v1033 = vtanh.pop %v1019
  %v1034 = vtanh.pop %v1020
  %v1037 = vrot.slane %v903, 7
  %v1038 = vrot.slane %v904, 7
  %v1041 = vmul.f32 %v1030, %v1037
  %v1042 = vmul.f32 %v1032, %v1038
  %1045 = vrot.lane.b32.xlu0 %v1033, 112
  %v1046 = vpop.permute.xlu0 %1045
  %1047 = vrot.lane.b32.xlu0 %v1034, 112
  %v1048 = vpop.permute.xlu0 %1047
  %v1051 = vmul.f32 %v1030, %v1046
  %v1052 = vmul.f32 %v1032, %v1048
  %1055 = vrot.lane.b32.xlu0 %v1051, 8
  %v1056 = vpop.permute.xlu0 %1055
  %1057 = vrot.lane.b32.xlu0 %v1052, 8
  %v1058 = vpop.permute.xlu0 %1057
  %v1061 = vadd.f32 %v1041, %v1056
  %v1062 = vadd.f32 %v1042, %v1058
  %v1063 = vtanh.pop %v1061
  %v1064 = vtanh.pop %v1062
  %1067 = vrot.lane.b32.xlu0 %v1063, 16
  %v1068 = vpop.permute.xlu0 %1067
  %1069 = vrot.lane.b32.xlu0 %v1064, 16
  %v1070 = vpop.permute.xlu0 %1069
  %v1073 = vmul.f32 %v1030, %v1068
  %v1074 = vmul.f32 %v1032, %v1070
  %1076 = vset.pattern.permute.xlu0 24
  %1077 = vperm.xlu0 %1076, %v1073
  %v1078 = vpop.permute.xlu0 %1077
  %1081 = vset.pattern.permute.xlu0 24
  %1082 = vperm.xlu0 %1081, %v1074
  %v1083 = vpop.permute.xlu0 %1082
  %v1085 = vmul.f32 %v1078, %v151
  %v1086 = vmul.f32 %v1083, %v151
  %1087 = vset.pattern.permute.xlu0 25
  %1088 = vperm.xlu0 %1087, %v1073
  %v1089 = vpop.permute.xlu0 %1088
  %1091 = vset.pattern.permute.xlu0 25
  %1092 = vperm.xlu0 %1091, %v1074
  %v1093 = vpop.permute.xlu0 %1092
  %v1095 = vmul.f32 %v1089, %v160
  %v1096 = vmul.f32 %v1093, %v160
  %v1097 = vadd.f32 %v1085, %v1095
  %v1098 = vadd.f32 %v1086, %v1096
  %1099 = vset.pattern.permute.xlu0 26
  %1100 = vperm.xlu0 %1099, %v1073
  %v1101 = vpop.permute.xlu0 %1100
  %1103 = vset.pattern.permute.xlu0 26
  %1104 = vperm.xlu0 %1103, %v1074
  %v1105 = vpop.permute.xlu0 %1104
  %v1107 = vmul.f32 %v1101, %v170
  %v1108 = vmul.f32 %v1105, %v170
  %v1109 = vadd.f32 %v1097, %v1107
  %v1110 = vadd.f32 %v1098, %v1108
  %1111 = vset.pattern.permute.xlu0 27
  %1112 = vperm.xlu0 %1111, %v1073
  %v1113 = vpop.permute.xlu0 %1112
  %1115 = vset.pattern.permute.xlu0 27
  %1116 = vperm.xlu0 %1115, %v1074
  %v1117 = vpop.permute.xlu0 %1116
  %v1119 = vmul.f32 %v1113, %v180
  %v1120 = vmul.f32 %v1117, %v180
  %v1121 = vadd.f32 %v1109, %v1119
  %v1122 = vadd.f32 %v1110, %v1120
  %1123 = vset.pattern.permute.xlu0 28
  %1124 = vperm.xlu0 %1123, %v1073
  %v1125 = vpop.permute.xlu0 %1124
  %1127 = vset.pattern.permute.xlu0 28
  %1128 = vperm.xlu0 %1127, %v1074
  %v1129 = vpop.permute.xlu0 %1128
  %v1131 = vmul.f32 %v1125, %v190
  %v1132 = vmul.f32 %v1129, %v190
  %v1133 = vadd.f32 %v1121, %v1131
  %v1134 = vadd.f32 %v1122, %v1132
  %1135 = vset.pattern.permute.xlu0 29
  %1136 = vperm.xlu0 %1135, %v1073
  %v1137 = vpop.permute.xlu0 %1136
  %1139 = vset.pattern.permute.xlu0 29
  %1140 = vperm.xlu0 %1139, %v1074
  %v1141 = vpop.permute.xlu0 %1140
  %v1143 = vmul.f32 %v1137, %v200
  %v1144 = vmul.f32 %v1141, %v200
  %v1145 = vadd.f32 %v1133, %v1143
  %v1146 = vadd.f32 %v1134, %v1144
  %1147 = vset.pattern.permute.xlu0 30
  %1148 = vperm.xlu0 %1147, %v1073
  %v1149 = vpop.permute.xlu0 %1148
  %1151 = vset.pattern.permute.xlu0 30
  %1152 = vperm.xlu0 %1151, %v1074
  %v1153 = vpop.permute.xlu0 %1152
  %v1155 = vmul.f32 %v1149, %v210
  %v1156 = vmul.f32 %v1153, %v210
  %v1157 = vadd.f32 %v1145, %v1155
  %v1158 = vadd.f32 %v1146, %v1156
  %1159 = vset.pattern.permute.xlu0 31
  %1160 = vperm.xlu0 %1159, %v1073
  %v1161 = vpop.permute.xlu0 %1160
  %1163 = vset.pattern.permute.xlu0 31
  %1164 = vperm.xlu0 %1163, %v1074
  %v1165 = vpop.permute.xlu0 %1164
  %v1167 = vmul.f32 %v1161, %v220
  %v1168 = vmul.f32 %v1165, %v220
  %v1169 = vadd.f32 %v1157, %v1167
  %v1170 = vadd.f32 %v1158, %v1168
  %v1173 = vrot.slane %v1169, 7
  %v1174 = vrot.slane %v1170, 7
  %v1177 = vadd.f32 %v132, %v1173
  %v1178 = vadd.f32 %v137, %v1174
  %v1179 = vxor.u32 %v1177, 2147483648
  %v1180 = vxor.u32 %v1178, 2147483648
  %v1181 = vmul.f32 %v1179, 1.442695
  %v1182 = vpow.pop %v1181
  %v1183 = vmul.f32 %v1180, 1.442695
  %v1184 = vpow.pop %v1183
  %v1185 = vadd.f32 %v1182, 1.0
  %v1186 = vadd.f32 %v1184, 1.0
  %v1187 = vrcp.pop %v1185
  %v1188 = vmul.f32 1.0, %v1187
  %v1189 = vrcp.pop %v1186
  %v1190 = vmul.f32 1.0, %v1189
  %v1191 = vtanh.pop %v1177
  %v1192 = vtanh.pop %v1178
  %v1195 = vrot.slane %v1061, 7
  %v1196 = vrot.slane %v1062, 7
  %v1199 = vmul.f32 %v1188, %v1195
  %v1200 = vmul.f32 %v1190, %v1196
  %1203 = vrot.lane.b32.xlu0 %v1191, 112
  %v1204 = vpop.permute.xlu0 %1203
  %1205 = vrot.lane.b32.xlu0 %v1192, 112
  %v1206 = vpop.permute.xlu0 %1205
  %v1209 = vmul.f32 %v1188, %v1204
  %v1210 = vmul.f32 %v1190, %v1206
  %1213 = vrot.lane.b32.xlu0 %v1209, 8
  %v1214 = vpop.permute.xlu0 %1213
  %1215 = vrot.lane.b32.xlu0 %v1210, 8
  %v1216 = vpop.permute.xlu0 %1215
  %v1219 = vadd.f32 %v1199, %v1214
  %v1220 = vadd.f32 %v1200, %v1216
  %v1221 = vtanh.pop %v1219
  %v1222 = vtanh.pop %v1220
  %1225 = vrot.lane.b32.xlu0 %v1221, 16
  %v1226 = vpop.permute.xlu0 %1225
  %1227 = vrot.lane.b32.xlu0 %v1222, 16
  %v1228 = vpop.permute.xlu0 %1227
  %v1231 = vmul.f32 %v1188, %v1226
  %v1232 = vmul.f32 %v1190, %v1228
  %1234 = vset.pattern.permute.xlu0 24
  %1235 = vperm.xlu0 %1234, %v1231
  %v1236 = vpop.permute.xlu0 %1235
  %1239 = vset.pattern.permute.xlu0 24
  %1240 = vperm.xlu0 %1239, %v1232
  %v1241 = vpop.permute.xlu0 %1240
  %v1243 = vmul.f32 %v1236, %v151
  %v1244 = vmul.f32 %v1241, %v151
  %1245 = vset.pattern.permute.xlu0 25
  %1246 = vperm.xlu0 %1245, %v1231
  %v1247 = vpop.permute.xlu0 %1246
  %1249 = vset.pattern.permute.xlu0 25
  %1250 = vperm.xlu0 %1249, %v1232
  %v1251 = vpop.permute.xlu0 %1250
  %v1253 = vmul.f32 %v1247, %v160
  %v1254 = vmul.f32 %v1251, %v160
  %v1255 = vadd.f32 %v1243, %v1253
  %v1256 = vadd.f32 %v1244, %v1254
  %1257 = vset.pattern.permute.xlu0 26
  %1258 = vperm.xlu0 %1257, %v1231
  %v1259 = vpop.permute.xlu0 %1258
  %1261 = vset.pattern.permute.xlu0 26
  %1262 = vperm.xlu0 %1261, %v1232
  %v1263 = vpop.permute.xlu0 %1262
  %v1265 = vmul.f32 %v1259, %v170
  %v1266 = vmul.f32 %v1263, %v170
  %v1267 = vadd.f32 %v1255, %v1265
  %v1268 = vadd.f32 %v1256, %v1266
  %1269 = vset.pattern.permute.xlu0 27
  %1270 = vperm.xlu0 %1269, %v1231
  %v1271 = vpop.permute.xlu0 %1270
  %1273 = vset.pattern.permute.xlu0 27
  %1274 = vperm.xlu0 %1273, %v1232
  %v1275 = vpop.permute.xlu0 %1274
  %v1277 = vmul.f32 %v1271, %v180
  %v1278 = vmul.f32 %v1275, %v180
  %v1279 = vadd.f32 %v1267, %v1277
  %v1280 = vadd.f32 %v1268, %v1278
  %1281 = vset.pattern.permute.xlu0 28
  %1282 = vperm.xlu0 %1281, %v1231
  %v1283 = vpop.permute.xlu0 %1282
  %1285 = vset.pattern.permute.xlu0 28
  %1286 = vperm.xlu0 %1285, %v1232
  %v1287 = vpop.permute.xlu0 %1286
  %v1289 = vmul.f32 %v1283, %v190
  %v1290 = vmul.f32 %v1287, %v190
  %v1291 = vadd.f32 %v1279, %v1289
  %v1292 = vadd.f32 %v1280, %v1290
  %1293 = vset.pattern.permute.xlu0 29
  %1294 = vperm.xlu0 %1293, %v1231
  %v1295 = vpop.permute.xlu0 %1294
  %1297 = vset.pattern.permute.xlu0 29
  %1298 = vperm.xlu0 %1297, %v1232
  %v1299 = vpop.permute.xlu0 %1298
  %v1301 = vmul.f32 %v1295, %v200
  %v1302 = vmul.f32 %v1299, %v200
  %v1303 = vadd.f32 %v1291, %v1301
  %v1304 = vadd.f32 %v1292, %v1302
  %1305 = vset.pattern.permute.xlu0 30
  %1306 = vperm.xlu0 %1305, %v1231
  %v1307 = vpop.permute.xlu0 %1306
  %1309 = vset.pattern.permute.xlu0 30
  %1310 = vperm.xlu0 %1309, %v1232
  %v1311 = vpop.permute.xlu0 %1310
  %v1313 = vmul.f32 %v1307, %v210
  %v1314 = vmul.f32 %v1311, %v210
  %v1315 = vadd.f32 %v1303, %v1313
  %v1316 = vadd.f32 %v1304, %v1314
  %1317 = vset.pattern.permute.xlu0 31
  %1318 = vperm.xlu0 %1317, %v1231
  %v1319 = vpop.permute.xlu0 %1318
  %1321 = vset.pattern.permute.xlu0 31
  %1322 = vperm.xlu0 %1321, %v1232
  %v1323 = vpop.permute.xlu0 %1322
  %v1325 = vmul.f32 %v1319, %v220
  %v1326 = vmul.f32 %v1323, %v220
  %v1327 = vadd.f32 %v1315, %v1325
  %v1328 = vadd.f32 %v1316, %v1326
  %v1331 = vrot.slane %v1327, 7
  %v1332 = vrot.slane %v1328, 7
  %v1335 = vadd.f32 %v132, %v1331
  %v1336 = vadd.f32 %v137, %v1332
  %v1337 = vxor.u32 %v1335, 2147483648
  %v1338 = vxor.u32 %v1336, 2147483648
  %v1339 = vmul.f32 %v1337, 1.442695
  %v1340 = vpow.pop %v1339
  %v1341 = vmul.f32 %v1338, 1.442695
  %v1342 = vpow.pop %v1341
  %v1343 = vadd.f32 %v1340, 1.0
  %v1344 = vadd.f32 %v1342, 1.0
  %v1345 = vrcp.pop %v1343
  %v1346 = vmul.f32 1.0, %v1345
  %v1347 = vrcp.pop %v1344
  %v1348 = vmul.f32 1.0, %v1347
  %v1349 = vtanh.pop %v1335
  %v1350 = vtanh.pop %v1336
  %v1353 = vrot.slane %v1219, 7
  %v1354 = vrot.slane %v1220, 7
  %v1357 = vmul.f32 %v1346, %v1353
  %v1358 = vmul.f32 %v1348, %v1354
  %1361 = vrot.lane.b32.xlu0 %v1349, 112
  %v1362 = vpop.permute.xlu0 %1361
  %1363 = vrot.lane.b32.xlu0 %v1350, 112
  %v1364 = vpop.permute.xlu0 %1363
  %v1367 = vmul.f32 %v1346, %v1362
  %v1368 = vmul.f32 %v1348, %v1364
  %1371 = vrot.lane.b32.xlu0 %v1367, 8
  %v1372 = vpop.permute.xlu0 %1371
  %1373 = vrot.lane.b32.xlu0 %v1368, 8
  %v1374 = vpop.permute.xlu0 %1373
  %v1377 = vadd.f32 %v1357, %v1372
  %v1378 = vadd.f32 %v1358, %v1374
  %v1379 = vtanh.pop %v1377
  %v1380 = vtanh.pop %v1378
  %1383 = vrot.lane.b32.xlu0 %v1379, 16
  %v1384 = vpop.permute.xlu0 %1383
  %1385 = vrot.lane.b32.xlu0 %v1380, 16
  %v1386 = vpop.permute.xlu0 %1385
  %v1389 = vmul.f32 %v1346, %v1384
  %v1390 = vmul.f32 %v1348, %v1386
  %v1393 = vrot.slane %v1390, 7
  %1394 = vrot.lane.b32.xlu0 %v1389, 104
  %v1395 = vpop.permute.xlu0 %1394
  %1396 = vrot.lane.b32.xlu0 %v1393, 104
  %v1397 = vpop.permute.xlu0 %1396
  %vm1400 = vcmask 64519
  %1401 = vst.msk [vmem:[#allocation3 - $0x7] sm:$0x80] %vm1400, %v1395
  %vm1402 = vcmask 57344
  %1403 = vst.msk [vmem:[#allocation3 + $0x1] sm:$0x1] %vm1402, %v1397
  %v1406 = vrot.slane %v1378, 7
  %1407 = vrot.lane.b32.xlu0 %v1377, 120
  %v1408 = vpop.permute.xlu0 %1407
  %1409 = vrot.lane.b32.xlu0 %v1406, 120
  %v1410 = vpop.permute.xlu0 %1409
  %1413 = vst.msk [vmem:[#allocation4 - $0x7] sm:$0x80] %vm1400, %v1408
  %1414 = vst.msk [vmem:[#allocation4 + $0x1] sm:$0x1] %vm1402, %v1410
  // Predicated region
  $region30: #{tpu_custom_call.1} parent=0 // pred_check
    %p1415 = pneg %p25
  $region31: #{tpu_custom_call.1} parent=0 // pred_check_branch
    %1417 = sbr.rel (%p1415) target = $region33
  $region32: #{tpu_custom_call.1} parent=0 // pred_region
    %v1418 = vld [vmem:[%s4] sm:$0x1]
    %v1420 = vlaneseq
    %v1421 = vshrl.u32 %v1420, 7
    %v1422 = vsub.s32 0, %v1421
    %v1423 = vrot.slane %v1418, %v1422
    %1424 = vrot.lane.b32.xlu0 %v1423, 24
    %v1425 = vpop.permute.xlu0 %1424
    %v1427 = vmul.f32 %v1389, %v1425
    %v1428 = vmul.f32 %v1390, %v1425
    %v1431 = vrot.slane %v1428, 7
    %1432 = vrot.lane.b32.xlu0 %v1427, 104
    %v1433 = vpop.permute.xlu0 %1432
    %1434 = vrot.lane.b32.xlu0 %v1431, 104
    %v1435 = vpop.permute.xlu0 %1434
    %v1438 = vsel %vm1400, %v1433, 0.0
    %1439 = vadd.xlane.f32.xlu0 %v1438
    %v1440 = vpop.xlane.xlu0 %1439
    %v1441 = vsel %vm1402, %v1435, 0.0
    %1442 = vadd.xlane.f32.xlu0 %v1441
    %v1443 = vpop.xlane.xlu0 %1442
    %v1444 = vld [vmem:[#allocation5] sm:$0x1]
    %v1446 = vlaneseq
    %v1447 = vshrl.u32 %v1446, 7
    %v1448 = vsub.s32 0, %v1447
    %v1449 = vrot.slane %v1444, %v1448
    %v1451 = vadd.f32 %v1440, %v1449
    %v1452 = vadd.f32 %v1443, %v1449
    %vm1453 = vcmask 7175
    %1454 = vst.msk [vmem:[%s6 - $0x7] sm:$0x80] %vm1453, %v1451
    %vm1455 = vcmask 0
    %1456 = vst.msk [vmem:[%s6 + $0x1] sm:$0x1] %vm1455, %v1452
  $region33: #{tpu_custom_call.1} parent=0 // pred_fallthru
    _
  // Predicated region
  $region34: #{tpu_custom_call.1} parent=0 // pred_check
    _
  $region35: #{tpu_custom_call.1} parent=0 // pred_check_branch
    %1458 = sbr.rel (0) target = $region37
  $region36: #{tpu_custom_call.1} parent=0 // pred_region
    _
  $region37: #{tpu_custom_call.1} parent=0 // pred_fallthru
    _
  // Predicated region
  $region38: #{tpu_custom_call.1} parent=0 // pred_check
    _
  $region39: #{tpu_custom_call.1} parent=0 // pred_check_branch
    %1460 = sbr.rel (0) target = $region41
  $region40: #{tpu_custom_call.1} parent=0 // pred_region
    _
  $region41: #{tpu_custom_call.1} parent=0 // pred_fallthru
    _

</llo_original>
